<compile_context>
chip_gen: v7x
topology: tpu7x:2x2x1
jax: 0.10.0
libtpu: 0.0.40
codegen_flags: <defaults>
</compile_context>

<pallas_src>
import numpy as np

import jax
import jax.numpy as jnp
from jax import lax
from jax.experimental import pallas as pl
from jax.experimental.pallas import tpu as pltpu


# ----------------------------------------------------------------------------
# Fused kernel: out = relu(x @ W1 + b1 + temb(t)) @ W2 + b2, single grid step.
# t_ref is the scalar-prefetched timestep in SMEM.
# ----------------------------------------------------------------------------
def _fused_mlp_kernel(t_ref, x_ref, w1_ref, b1_ref, w2_ref, b2_ref, o_ref):
    hid = b1_ref.shape[-1]
    half = hid // 2

    # Sinusoidal timestep embedding, computed in-kernel (EUP transcendentals).
    t_val = t_ref[0].astype(jnp.float32)
    k = lax.broadcasted_iota(jnp.int32, (1, half), 1).astype(jnp.float32)
    freqs = jnp.exp(-jnp.log(10000.0) * k / half)          # (1, half)
    args = t_val * freqs
    temb = jnp.concatenate([jnp.sin(args), jnp.cos(args)], axis=-1)  # (1, hid)
    b1_t = b1_ref[...] + temb                               # time conditioning

    # Layer 1: full K resident (no reduction grid axis). bf16 operands on the
    # MXU, f32 accumulation / bias / ReLU.
    h = jnp.dot(x_ref[...].astype(jnp.bfloat16), w1_ref[...],
                preferred_element_type=jnp.float32)
    h = jnp.maximum(h + b1_t, 0.0)

    # Layer 2: full N resident -> one unmasked lane-dense store.
    o = jnp.dot(h.astype(jnp.bfloat16), w2_ref[...],
                preferred_element_type=jnp.float32)
    o_ref[...] = (o + b2_ref[...]).astype(o_ref.dtype)


def fused_mlp_pallas(x, t_arr, w1, b1, w2, b2):
    """out = relu(x @ w1 + b1 + temb(t)) @ w2 + b2, one single-step pallas_call.

    x: (B, K) f32, w1: (K, H) bf16, b1: (1, H) f32, w2: (H, N) bf16,
    b2: (1, N) f32, t_arr: (1,) int32  ->  (B, N) f32.
    """
    B, K = x.shape
    K2, H = w1.shape
    H2, N = w2.shape
    assert K == K2 and H == H2
    assert K % 128 == 0 and H % 128 == 0 and N % 128 == 0

    # Pad batch up to a multiple of 8 sublanes (free throughput headroom,
    # unmasked output stores). Padded rows are garbage and sliced off.
    B_pad = max(8, -(-B // 8) * 8)
    if B_pad != B:
        x = jnp.pad(x, ((0, B_pad - B), (0, 0)))

    out = pl.pallas_call(
        _fused_mlp_kernel,
        out_shape=jax.ShapeDtypeStruct((B_pad, N), jnp.float32),
        grid_spec=pltpu.PrefetchScalarGridSpec(
            num_scalar_prefetch=1,            # t -> SMEM
            grid=(1,),                        # everything VMEM-resident: 1 step
            in_specs=[
                pl.BlockSpec((B_pad, K), lambda i, t: (0, 0)),  # x
                pl.BlockSpec((K, H),     lambda i, t: (0, 0)),  # W1_eff
                pl.BlockSpec((1, H),     lambda i, t: (0, 0)),  # b1
                pl.BlockSpec((H, N),     lambda i, t: (0, 0)),  # W2_eff
                pl.BlockSpec((1, N),     lambda i, t: (0, 0)),  # b2_eff
            ],
            out_specs=pl.BlockSpec((B_pad, N), lambda i, t: (0, 0)),
        ),
        compiler_params=pltpu.CompilerParams(
            dimension_semantics=("arbitrary",),   # single step, no sharding
        ),
    )(t_arr, x, w1, b1, w2, b2)
    return out[:B]


# ----------------------------------------------------------------------------
# EpsilonNetSVD forward built around the fused kernel.
# ----------------------------------------------------------------------------
def timestep_embedding(t, dim):
    """Sinusoidal timestep embedding (plain-JAX, used only by the references)."""
    half = dim // 2
    freqs = jnp.exp(-jnp.log(10000.0) * jnp.arange(half, dtype=jnp.float32) / half)
    args = jnp.float32(t) * freqs
    return jnp.concatenate([jnp.sin(args), jnp.cos(args)], axis=0)  # (dim,)


def precompose_params(params):
    """Fold the static H_func.V / H_func.Vt rotations into the net weights.

    x @ V^T @ W1       ->  x @ W1_eff,        W1_eff = V^T @ W1
    (h @ W2 + b2) @ V  ->  h @ W2_eff + b2_eff, W2_eff = W2 @ V, b2_eff = b2 @ V
    Exact algebra (the NCHW reshape round trip is a no-op for a flat MLP net);
    composed once in f32, stored in bf16 for the MXU.
    """
    V = params["V_mat"].astype(jnp.float32)
    W1 = params["W1"].astype(jnp.float32)
    W2 = params["W2"].astype(jnp.float32)
    return {
        "W1_eff": (V.T @ W1).astype(jnp.bfloat16),        # (D, HID)
        "W2_eff": (W2 @ V).astype(jnp.bfloat16),          # (HID, D)
        "b1": params["b1"].astype(jnp.float32),           # (HID,)
        "b2_eff": (params["b2"].astype(jnp.float32) @ V), # (D,) f32
    }


def epsilon_net_svd_forward(x, t, fused_params):
    """EpsilonNetSVD.forward.  x: (B, D) spectral-domain input -> (B, D)."""
    B, D = x.shape
    # Mirror the module's reshape bookkeeping: shape = (B, 3, sqrt(D//3), -1).
    # For the flat-MLP `net` the NCHW reshape + flatten round trip is a no-op
    # and has been folded into the precomposed weights.
    side = int(np.sqrt(D // 3))
    assert 3 * side * side == D, "last dim must be 3 * side * side"

    hid = fused_params["W1_eff"].shape[1]
    t_arr = jnp.asarray([t], dtype=jnp.int32)
    return fused_mlp_pallas(
        x, t_arr,
        fused_params["W1_eff"], fused_params["b1"].reshape(1, hid),
        fused_params["W2_eff"], fused_params["b2_eff"].reshape(1, D))


# ----------------------------------------------------------------------------
# References for verification.
# ----------------------------------------------------------------------------
def reference_forward_f32(x, t, params):
    """Pure-JAX f32 reference of the original (unfused) module math."""
    V, W1, b1, W2, b2 = (params[k] for k in ("V_mat", "W1", "b1", "W2", "b2"))
    x_pix = x @ V.T                                   # H_func.V
    temb = timestep_embedding(t, W1.shape[1])
    h = jnp.maximum(x_pix @ W1 + b1 + temb, 0.0)      # net layer 1
    eps = h @ W2 + b2                                 # net layer 2
    return eps @ V                                    # H_func.Vt


def reference_forward_bf16(x, t, fused):
    """Plain-JAX reference mirroring the kernel's precomposed bf16 path."""
    temb = timestep_embedding(t, fused["W1_eff"].shape[1])
    h = jnp.dot(x.astype(jnp.bfloat16), fused["W1_eff"],
                preferred_element_type=jnp.float32)
    h = jnp.maximum(h + fused["b1"] + temb, 0.0)
    o = jnp.dot(h.astype(jnp.bfloat16), fused["W2_eff"],
                preferred_element_type=jnp.float32)
    return o + fused["b2_eff"]


if __name__ == "__main__":
    # Small shapes: batch=2, channels=3, spatial=16 -> D = 3*16*16 = 768.
    B, C, side = 2, 3, 16
    D = C * side * side          # 768  (6 * 128)
    HID = 512                    # net hidden width (4 * 128)
    t = 10

    key = jax.random.PRNGKey(0)
    kx, kv, k1, kb1, k2, kb2 = jax.random.split(key, 6)

    x = jax.random.normal(kx, (B, D), dtype=jnp.float32)

    # Synthetic orthonormal V for H_func (QR of a random matrix).
    V_mat, _ = jnp.linalg.qr(jax.random.normal(kv, (D, D), dtype=jnp.float32))

    params = {
        "V_mat": V_mat.astype(jnp.float32),
        "W1": jax.random.normal(k1, (D, HID), jnp.float32) * (1.0 / np.sqrt(D)),
        "b1": jax.random.normal(kb1, (HID,), jnp.float32) * 0.01,
        "W2": jax.random.normal(k2, (HID, D), jnp.float32) * (1.0 / np.sqrt(HID)),
        "b2": jax.random.normal(kb2, (D,), jnp.float32) * 0.01,
    }

    fused = precompose_params(params)

    out = epsilon_net_svd_forward(x, t, fused)
    out = jax.block_until_ready(out)
    assert out.shape == (B, D)

    # Tight check vs. a plain-JAX path using identical precomposed bf16
    # weights (isolates kernel / BlockSpec bugs from quantization error).
    ref_bf16 = reference_forward_bf16(x, t, fused)
    np.testing.assert_allclose(np.asarray(out), np.asarray(ref_bf16),
                               rtol=3e-3, atol=3e-3)

    # Loose check vs. the full-f32 unfused module math (bf16 weight streaming
    # costs ~1e-2 absolute at these magnitudes).
    ref_f32 = reference_forward_f32(x, t, params)
    np.testing.assert_allclose(np.asarray(out), np.asarray(ref_f32),
                               rtol=5e-2, atol=5e-2)

    print("KERNEL_OK")
</pallas_src>

<mosaic_0001>
module attributes {stable_mosaic.version = 11 : i64} {
  func.func @_fused_mlp_kernel(%arg0: i32, %arg1: memref<1xi32, #tpu.memory_space<smem>>, %arg2: memref<8x768xf32, #tpu.memory_space<vmem>>, %arg3: memref<768x512xbf16, #tpu.memory_space<vmem>>, %arg4: memref<1x512xf32, #tpu.memory_space<vmem>>, %arg5: memref<512x768xbf16, #tpu.memory_space<vmem>>, %arg6: memref<1x768xf32, #tpu.memory_space<vmem>>, %arg7: memref<8x768xf32, #tpu.memory_space<vmem>>) attributes {dimension_semantics = [#tpu.dimension_semantics<arbitrary>], iteration_bounds = array<i64: 1>, scalar_prefetch = 1 : i64, scratch_operands = 0 : i64, tpu.core_type = #tpu.core_type<tc>, window_params = [{pipeline_mode = #tpu.pipeline_mode<synchronous>, transform_indices = @transform_0, window_bounds = array<i64: 8, 768>}, {pipeline_mode = #tpu.pipeline_mode<synchronous>, transform_indices = @transform_1, window_bounds = array<i64: 768, 512>}, {pipeline_mode = #tpu.pipeline_mode<synchronous>, transform_indices = @transform_2, window_bounds = array<i64: 1, 512>}, {pipeline_mode = #tpu.pipeline_mode<synchronous>, transform_indices = @transform_3, window_bounds = array<i64: 512, 768>}, {pipeline_mode = #tpu.pipeline_mode<synchronous>, transform_indices = @transform_4, window_bounds = array<i64: 1, 768>}, {pipeline_mode = #tpu.pipeline_mode<synchronous>, transform_indices = @transform_5, window_bounds = array<i64: 8, 768>}]} {
    %c0 = arith.constant 0 : index
    %0 = memref.load %arg1[%c0] : memref<1xi32, #tpu.memory_space<smem>>
    %1 = arith.sitofp %0 : i32 to f32
    %2 = tpu.iota {dimensions = array<i32: 1>} : vector<1x256xi32>
    %3 = arith.sitofp %2 : vector<1x256xi32> to vector<1x256xf32>
    %cst = arith.constant 1.000000e+04 : f32
    %4 = math.log %cst : f32
    %cst_0 = arith.constant 0.000000e+00 : f32
    %5 = arith.subf %cst_0, %4 : f32
    %6 = vector.broadcast %5 : f32 to vector<1x256xf32>
    %7 = arith.mulf %6, %3 : vector<1x256xf32>
    %cst_1 = arith.constant 2.560000e+02 : f32
    %8 = vector.broadcast %cst_1 : f32 to vector<1x256xf32>
    %9 = arith.divf %7, %8 : vector<1x256xf32>
    %10 = math.exp %9 : vector<1x256xf32>
    %11 = vector.broadcast %1 : f32 to vector<1x256xf32>
    %12 = arith.mulf %11, %10 : vector<1x256xf32>
    %13 = math.sin %12 : vector<1x256xf32>
    %14 = math.cos %12 : vector<1x256xf32>
    %15 = tpu.concatenate %13, %14 in 1 : vector<1x256xf32>, vector<1x256xf32> -> vector<1x512xf32>
    %c0_2 = arith.constant 0 : index
    %c0_3 = arith.constant 0 : index
    %16 = vector.load %arg4[%c0_2, %c0_3] : memref<1x512xf32, #tpu.memory_space<vmem>>, vector<1x512xf32>
    %17 = arith.addf %16, %15 : vector<1x512xf32>
    %c0_4 = arith.constant 0 : index
    %c0_5 = arith.constant 0 : index
    %18 = vector.load %arg2[%c0_4, %c0_5] : memref<8x768xf32, #tpu.memory_space<vmem>>, vector<8x768xf32>
    %19 = arith.truncf %18 : vector<8x768xf32> to vector<8x768xbf16>
    %c0_6 = arith.constant 0 : index
    %c0_7 = arith.constant 0 : index
    %20 = vector.load %arg3[%c0_6, %c0_7] : memref<768x512xbf16, #tpu.memory_space<vmem>>, vector<768x512xbf16>
    %cst_8 = arith.constant dense<0.000000e+00> : vector<8x512xf32>
    %21 = tpu.matmul %19, %20, %cst_8 {dimension_numbers = #tpu.dot_dimension_numbers<[1], [0], [0], [1], [0, 0, 1, 1], [], []>} : vector<8x768xbf16>, vector<768x512xbf16>, vector<8x512xf32> -> vector<8x512xf32>
    %22 = vector.broadcast %17 : vector<1x512xf32> to vector<8x512xf32>
    %23 = arith.addf %21, %22 : vector<8x512xf32>
    %cst_9 = arith.constant 0.000000e+00 : f32
    %24 = vector.broadcast %cst_9 : f32 to vector<8x512xf32>
    %25 = arith.maximumf %23, %24 : vector<8x512xf32>
    %26 = arith.truncf %25 : vector<8x512xf32> to vector<8x512xbf16>
    %c0_10 = arith.constant 0 : index
    %c0_11 = arith.constant 0 : index
    %27 = vector.load %arg5[%c0_10, %c0_11] : memref<512x768xbf16, #tpu.memory_space<vmem>>, vector<512x768xbf16>
    %cst_12 = arith.constant dense<0.000000e+00> : vector<8x768xf32>
    %28 = tpu.matmul %26, %27, %cst_12 {dimension_numbers = #tpu.dot_dimension_numbers<[1], [0], [0], [1], [0, 0, 1, 1], [], []>} : vector<8x512xbf16>, vector<512x768xbf16>, vector<8x768xf32> -> vector<8x768xf32>
    %c0_13 = arith.constant 0 : index
    %c0_14 = arith.constant 0 : index
    %29 = vector.load %arg6[%c0_13, %c0_14] : memref<1x768xf32, #tpu.memory_space<vmem>>, vector<1x768xf32>
    %30 = vector.broadcast %29 : vector<1x768xf32> to vector<8x768xf32>
    %31 = arith.addf %28, %30 : vector<8x768xf32>
    %c0_15 = arith.constant 0 : index
    %c0_16 = arith.constant 0 : index
    %32 = vector.load %arg7[%c0_15, %c0_16] : memref<8x768xf32, #tpu.memory_space<vmem>>, vector<8x768xf32>
    tpu.vector_store %arg7[%c0_15, %c0_16], %31 {strides = array<i32>} : memref<8x768xf32, #tpu.memory_space<vmem>>, vector<8x768xf32>,
    return
  }
  func.func @transform_0(%arg0: i32, %arg1: memref<1xi32, #tpu.memory_space<smem>>) -> (i32, i32) {
    %c0_i32 = arith.constant 0 : i32
    %c0_i32_0 = arith.constant 0 : i32
    %c0_i32_1 = arith.constant 0 : i32
    return %c0_i32, %c0_i32_0 : i32, i32
  }
  func.func @transform_1(%arg0: i32, %arg1: memref<1xi32, #tpu.memory_space<smem>>) -> (i32, i32) {
    %c0_i32 = arith.constant 0 : i32
    %c0_i32_0 = arith.constant 0 : i32
    %c0_i32_1 = arith.constant 0 : i32
    return %c0_i32, %c0_i32_0 : i32, i32
  }
  func.func @transform_2(%arg0: i32, %arg1: memref<1xi32, #tpu.memory_space<smem>>) -> (i32, i32) {
    %c0_i32 = arith.constant 0 : i32
    %c0_i32_0 = arith.constant 0 : i32
    %c0_i32_1 = arith.constant 0 : i32
    return %c0_i32, %c0_i32_0 : i32, i32
  }
  func.func @transform_3(%arg0: i32, %arg1: memref<1xi32, #tpu.memory_space<smem>>) -> (i32, i32) {
    %c0_i32 = arith.constant 0 : i32
    %c0_i32_0 = arith.constant 0 : i32
    %c0_i32_1 = arith.constant 0 : i32
    return %c0_i32, %c0_i32_0 : i32, i32
  }
  func.func @transform_4(%arg0: i32, %arg1: memref<1xi32, #tpu.memory_space<smem>>) -> (i32, i32) {
    %c0_i32 = arith.constant 0 : i32
    %c0_i32_0 = arith.constant 0 : i32
    %c0_i32_1 = arith.constant 0 : i32
    return %c0_i32, %c0_i32_0 : i32, i32
  }
  func.func @transform_5(%arg0: i32, %arg1: memref<1xi32, #tpu.memory_space<smem>>) -> (i32, i32) {
    %c0_i32 = arith.constant 0 : i32
    %c0_i32_0 = arith.constant 0 : i32
    %c0_i32_1 = arith.constant 0 : i32
    return %c0_i32, %c0_i32_0 : i32, i32
  }
}

</mosaic_0001>

<llo_original>
// kernel: tpu_custom_call.1
$region0: #{tpu_custom_call.1}
  #allocation0 [shape = 'u32[]', space=smem, size = 0x4, offset = 0x4, fixed_abs, tag = 'smem constant byte address 0x4 - core index']
  #allocation1 [shape = 'u32[144,128]{1,0:T(1,128)}', space=vmem, size = 0x12000, scoped, tag = 'internal scratch']
  #allocation2 [shape = 's32[1]{0}', space=sflag, size = 0x4, scoped, tag = 'scoped memory for tpu_custom_call.1']
  #allocation3 [shape = 's32[1]{0:T(128)S(6)}', space=smem, size = 0x200, scoped, tag = 'prefetched SMEM operand 0']
  %s0 = inlined_call_operand.<no memory space> [shape: s32[1], index: 0, kind: input, shape index: {}]
  %s1 = inlined_call_operand.hbm [shape: f32[8,768], index: 1, kind: input, shape index: {}]
  %s2 = inlined_call_operand.hbm [shape: bf16[768,512], index: 2, kind: input, shape index: {}]
  %s3 = inlined_call_operand.vmem [shape: f32[1,512], index: 3, kind: input, shape index: {}]
  %s4 = inlined_call_operand.hbm [shape: bf16[512,768], index: 4, kind: input, shape index: {}]
  %s5 = inlined_call_operand.vmem [shape: f32[1,768], index: 5, kind: input, shape index: {}]
  %s6 = inlined_call_operand.hbm [shape: f32[8,768], index: 6, kind: output, shape index: {}]
  %s7 = sld [smem:[#allocation0]]
  $region42: #{tpu_custom_call.1} parent=0
    _
  %s9 = ssub.s32 1, %s7
  %s10 = scalar_select 0, %s9, %s7
  %11 = sst [smem:[#allocation3]] %s0
  $region1: #{tpu_custom_call.1} parent=0
    #allocation4 [shape = 'u8[24576]{0}', space=vmem, size = 0x6000, scoped, tag = 'input window, operand 1, single buffered']
    #allocation5 [shape = 's32[1]{0}', space=sflag, size = 0x4, scoped, tag = 'scoped memory for tpu_custom_call.1']
    #allocation6 [shape = 's32[1]{0}', space=sflag, size = 0x4, scoped, tag = 'scoped memory for tpu_custom_call.1']
    #allocation7 [shape = 'u8[786432]{0}', space=vmem, size = 0xc0000, scoped, tag = 'input window, operand 2, single buffered']
    #allocation8 [shape = 's32[1]{0}', space=sflag, size = 0x4, scoped, tag = 'scoped memory for tpu_custom_call.1']
    #allocation9 [shape = 'u8[786432]{0}', space=vmem, size = 0xc0000, scoped, tag = 'input window, operand 4, single buffered']
    #allocation10 [shape = 'u8[24576]{0}', space=vmem, size = 0x6000, scoped, tag = 'output window, operand 0, single buffered']
    %12 = vsyncpa [#allocation5], 0
    %13 = vsyncpa [#allocation8], 0
    %14 = vsyncpa [#allocation6], 0
    // Predicated region
    $region2: #{tpu_custom_call.1} parent=1 // pred_check
      _
    $region3: #{tpu_custom_call.1} parent=1 // pred_check_branch
      %16 = sbr.rel (0) target = $region5
    $region4: #{tpu_custom_call.1} parent=1 // pred_region
      %s18 = ssub.s32 768, 768
      %19 = vsyncadd [#allocation5], %s18
      %s21 = sshll.u32 [#allocation4], 4
      %s22 = int_to_ptr.vmem [resolvable:$true] %s21
      %24 = dma.hbm_to_vmem [thread:$0]  %s1, 768, %s22, [#allocation5]
    $region5: #{tpu_custom_call.1} parent=1 // pred_fallthru
      _
    // Predicated region
    $region6: #{tpu_custom_call.1} parent=1 // pred_check
      _
    $region7: #{tpu_custom_call.1} parent=1 // pred_check_branch
      %26 = sbr.rel (0) target = $region9
    $region8: #{tpu_custom_call.1} parent=1 // pred_region
      %s28 = ssub.s32 24576, 24576
      %29 = vsyncadd [#allocation8], %s28
      %s30 = sshll.u32 [#allocation7], 4
      %s31 = int_to_ptr.vmem [resolvable:$true] %s30
      %36 = dma.hbm_to_vmem [thread:$0]  %s2, 24576, %s31, [#allocation8], 256, 256, 16
    $region9: #{tpu_custom_call.1} parent=1 // pred_fallthru
      _
    // Predicated region
    $region10: #{tpu_custom_call.1} parent=1 // pred_check
      _
    $region11: #{tpu_custom_call.1} parent=1 // pred_check_branch
      %38 = sbr.rel (0) target = $region13
    $region12: #{tpu_custom_call.1} parent=1 // pred_region
      _
    $region13: #{tpu_custom_call.1} parent=1 // pred_fallthru
      _
    // Predicated region
    $region14: #{tpu_custom_call.1} parent=1 // pred_check
      _
    $region15: #{tpu_custom_call.1} parent=1 // pred_check_branch
      %40 = sbr.rel (0) target = $region17
    $region16: #{tpu_custom_call.1} parent=1 // pred_region
      %s42 = ssub.s32 24576, 24576
      %43 = vsyncadd [#allocation8], %s42
      %s44 = sshll.u32 [#allocation9], 4
      %s45 = int_to_ptr.vmem [resolvable:$true] %s44
      %50 = dma.hbm_to_vmem [thread:$0]  %s4, 24576, %s45, [#allocation8], 384, 384, 24
    $region17: #{tpu_custom_call.1} parent=1 // pred_fallthru
      _
    // Predicated region
    $region18: #{tpu_custom_call.1} parent=1 // pred_check
      _
    $region19: #{tpu_custom_call.1} parent=1 // pred_check_branch
      %52 = sbr.rel (0) target = $region21
    $region20: #{tpu_custom_call.1} parent=1 // pred_region
      _
    $region21: #{tpu_custom_call.1} parent=1 // pred_fallthru
      _
    // Predicated region
    $region22: #{tpu_custom_call.1} parent=1 // pred_check
      _
    $region23: #{tpu_custom_call.1} parent=1 // pred_check_branch
      %54 = sbr.rel (0) target = $region25
    $region24: #{tpu_custom_call.1} parent=1 // pred_region
      %55 = dma.done [#allocation5], 768
    $region25: #{tpu_custom_call.1} parent=1 // pred_fallthru
      _
    // Predicated region
    $region26: #{tpu_custom_call.1} parent=1 // pred_check
      _
    $region27: #{tpu_custom_call.1} parent=1 // pred_check_branch
      %57 = sbr.rel (0) target = $region29
    $region28: #{tpu_custom_call.1} parent=1 // pred_region
      %58 = dma.done [#allocation8], 24576
    $region29: #{tpu_custom_call.1} parent=1 // pred_fallthru
      _
    // Predicated region
    $region30: #{tpu_custom_call.1} parent=1 // pred_check
      _
    $region31: #{tpu_custom_call.1} parent=1 // pred_check_branch
      %60 = sbr.rel (0) target = $region33
    $region32: #{tpu_custom_call.1} parent=1 // pred_region
      %61 = dma.done [#allocation8], 24576
    $region33: #{tpu_custom_call.1} parent=1 // pred_fallthru
      _
    %s62 = sld [smem:[#allocation3]]
    %s63 = scvt.s32.f32 %s62
    %v64 = vlaneseq
    %v65 = vand.u32 %v64, 127
    %v66 = vadd.s32 %v65, 128
    %v67 = vcvt.s32.f32 %v65
    %v68 = vcvt.s32.f32 %v66
    %v69 = vmul.f32 %v67, -9.2103405
    %v70 = vmul.f32 %v68, -9.2103405
    %v71 = vrcp.pop 256.0
    %v72 = vmul.f32 %v69, %v71
    %v73 = vmul.f32 %v70, %v71
    %v74 = vmul.f32 %v72, 1.442695
    %v75 = vpow.pop %v74
    %v76 = vmul.f32 %v73, 1.442695
    %v77 = vpow.pop %v76
    %v78 = vstv %s63
    %v79 = vmul.f32 %v78, %v75
    %v80 = vmul.f32 %v78, %v77
    %v81 = vand.u32 2147483647, %v79
    %vm82 = vcmp.le.f32.partialorder %v81, 0.7853982
    %vm83 = vcmp.lt.s32.totalorder %v79, 0
    %v84 = vand.u32 %v79, 2139095040
    %v85 = vshrl.u32 %v84, 23
    %v86 = vsub.s32 %v85, 127
    %v87 = vand.u32 2147483647, %v79
    %v88 = vand.u32 %v87, 8388607
    %v89 = vor.u32 %v88, 8388608
    %v90 = vsub.s32 0, %v89
    %v91 = vadd.s32 %v86, 1
    %vm92 = vcmp.gt.s32.totalorder %v91, 0
    %v93 = vsel %vm92, %v91, 0
    %v94 = vshrl.u32 %v93, 5
    %v95 = vand.u32 %v93, 31
    %v96 = vsub.s32 32, %v95
    %v97 = vshrl.u32 683565275, %v96
    %v98 = vshll.u32 683565275, %v95
    %v99 = vshrl.u32 2475754826, %v96
    %v100 = vor.u32 %v98, %v99
    %v101 = vshll.u32 2475754826, %v95
    %v102 = vshrl.u32 2131351028, %v96
    %v103 = vor.u32 %v101, %v102
    %v104 = vshll.u32 2131351028, %v95
    %v105 = vshrl.u32 2102212464, %v96
    %v106 = vor.u32 %v104, %v105
    %v107 = vshll.u32 2102212464, %v95
    %v108 = vshrl.u32 920167782, %v96
    %v109 = vor.u32 %v107, %v108
    %v110 = vshll.u32 920167782, %v95
    %v111 = vshrl.u32 1326507024, %v96
    %v112 = vor.u32 %v110, %v111
    %vm113 = vcmp.lt.s32.totalorder %v94, 1
    %vm114 = vcmp.lt.s32.totalorder %v94, 2
    %vm115 = vcmp.lt.s32.totalorder %v94, 3
    %vm116 = vcmp.lt.s32.totalorder %v94, 4
    %v117 = vsel %vm113, %v97, %v100
    %v118 = vsel %vm116, %v106, 2102212464
    %v119 = vsel %vm115, %v103, %v118
    %v120 = vsel %vm114, %v117, %v119
    %v121 = vsel %vm113, %v100, %v103
    %v122 = vsel %vm116, %v109, 920167782
    %v123 = vsel %vm115, %v106, %v122
    %v124 = vsel %vm114, %v121, %v123
    %v125 = vsel %vm113, %v103, %v106
    %v126 = vsel %vm116, %v112, 1326507024
    %v127 = vsel %vm115, %v109, %v126
    %v128 = vsel %vm114, %v125, %v127
    %v129 = vshll.u32 %v89, 8
    %v130 = vmul.u32.u64.compose %v129, %v128
    %v131 = vextract.low.u32 %v130
    %v132 = vextract.high.u32 %v130
    %v133 = vmul.u32.u64.compose %v129, %v124
    %v134 = vextract.low.u32 %v133
    %v135 = vextract.high.u32 %v133
    %v136 = vmul.u32 %v129, %v120
    %v137 = vadd.s32 %v132, %v134
    %vm138 = vc.u32 %v132, %v134
    %v139 = vadd.s32 %v135, 1
    %v140 = vsel %vm138, %v139, %v135
    %v141 = vadd.s32 %v136, %v140
    %v142 = vadd.s32 %v141, 536870912
    %v143 = vshrl.u32 %v142, 30
    %v144 = vshll.u32 %v143, 30
    %v145 = vsub.s32 %v141, %v144
    %vm146 = vcmp.lt.s32.totalorder %v145, 0
    %v147 = vsub.s32 0, %v145
    %v148 = vsel %vm146, %v147, %v145
    %v149 = vclz %v148
    %v150 = vsub.s32 %v149, 2
    %vm151 = vcmp.gt.s32.totalorder 0, %v150
    %v152 = vsel %vm151, 0, %v150
    %v153 = vsub.s32 32, %v152
    %v154 = vshll.u32 %v145, %v152
    %v155 = vshrl.u32 %v137, %v153
    %v156 = vor.u32 %v154, %v155
    %v157 = vsub.s32 4294967266, %v152
    %v158 = vadd.s32 %v157, 127
    %v159 = vshll.u32 %v158, 23
    %v160 = vor.u32 4788187, %v159
    %v161 = vand.u32 2147483647, %v160
    %v163 = vcvt.s32.f32 %v156
    %v164 = vmul.f32 %v163, %v161
    %v165 = vxor.u32 %v164, 2147483648
    %v166 = vsel %vm83, %v165, %v164
    %v167 = vsub.s32 4, %v143
    %v168 = vsel %vm83, %v167, %v143
    %v169 = vsel %vm82, %v79, %v166
    %v170 = vsel %vm82, 0, %v168
    %v171 = vcosq.f32.pop %v169
    %v172 = vsinq.f32.pop %v169
    %vm173 = vweird.f32 %v79
    %v174 = vadd.s32 %v170, 3
    %v175 = vand.u32 %v174, 3
    %vm176 = vcmp.lt.s32.totalorder %v175, 2
    %vm177 = vcmp.eq.s32.totalorder %v175, 0
    %v178 = vxor.u32 %v172, 2147483648
    %v179 = vsel %vm177, %v171, %v178
    %vm180 = vcmp.eq.s32.totalorder %v175, 2
    %v181 = vxor.u32 %v171, 2147483648
    %v182 = vsel %vm180, %v181, %v172
    %v183 = vsel %vm176, %v179, %v182
    %v184 = vsel %vm173, nan, %v183
    %v185 = vand.u32 2147483647, %v80
    %vm186 = vcmp.le.f32.partialorder %v185, 0.7853982
    %vm187 = vcmp.lt.s32.totalorder %v80, 0
    %v188 = vand.u32 %v80, 2139095040
    %v189 = vshrl.u32 %v188, 23
    %v190 = vsub.s32 %v189, 127
    %v191 = vand.u32 2147483647, %v80
    %v192 = vand.u32 %v191, 8388607
    %v193 = vor.u32 %v192, 8388608
    %v194 = vsub.s32 0, %v193
    %v195 = vadd.s32 %v190, 1
    %vm196 = vcmp.gt.s32.totalorder %v195, 0
    %v197 = vsel %vm196, %v195, 0
    %v198 = vshrl.u32 %v197, 5
    %v199 = vand.u32 %v197, 31
    %v200 = vsub.s32 32, %v199
    %v201 = vshrl.u32 683565275, %v200
    %v202 = vshll.u32 683565275, %v199
    %v203 = vshrl.u32 2475754826, %v200
    %v204 = vor.u32 %v202, %v203
    %v205 = vshll.u32 2475754826, %v199
    %v206 = vshrl.u32 2131351028, %v200
    %v207 = vor.u32 %v205, %v206
    %v208 = vshll.u32 2131351028, %v199
    %v209 = vshrl.u32 2102212464, %v200
    %v210 = vor.u32 %v208, %v209
    %v211 = vshll.u32 2102212464, %v199
    %v212 = vshrl.u32 920167782, %v200
    %v213 = vor.u32 %v211, %v212
    %v214 = vshll.u32 920167782, %v199
    %v215 = vshrl.u32 1326507024, %v200
    %v216 = vor.u32 %v214, %v215
    %vm217 = vcmp.lt.s32.totalorder %v198, 1
    %vm218 = vcmp.lt.s32.totalorder %v198, 2
    %vm219 = vcmp.lt.s32.totalorder %v198, 3
    %vm220 = vcmp.lt.s32.totalorder %v198, 4
    %v221 = vsel %vm217, %v201, %v204
    %v222 = vsel %vm220, %v210, 2102212464
    %v223 = vsel %vm219, %v207, %v222
    %v224 = vsel %vm218, %v221, %v223
    %v225 = vsel %vm217, %v204, %v207
    %v226 = vsel %vm220, %v213, 920167782
    %v227 = vsel %vm219, %v210, %v226
    %v228 = vsel %vm218, %v225, %v227
    %v229 = vsel %vm217, %v207, %v210
    %v230 = vsel %vm220, %v216, 1326507024
    %v231 = vsel %vm219, %v213, %v230
    %v232 = vsel %vm218, %v229, %v231
    %v233 = vshll.u32 %v193, 8
    %v234 = vmul.u32.u64.compose %v233, %v232
    %v235 = vextract.low.u32 %v234
    %v236 = vextract.high.u32 %v234
    %v237 = vmul.u32.u64.compose %v233, %v228
    %v238 = vextract.low.u32 %v237
    %v239 = vextract.high.u32 %v237
    %v240 = vmul.u32 %v233, %v224
    %v241 = vadd.s32 %v236, %v238
    %vm242 = vc.u32 %v236, %v238
    %v243 = vadd.s32 %v239, 1
    %v244 = vsel %vm242, %v243, %v239
    %v245 = vadd.s32 %v240, %v244
    %v246 = vadd.s32 %v245, 536870912
    %v247 = vshrl.u32 %v246, 30
    %v248 = vshll.u32 %v247, 30
    %v249 = vsub.s32 %v245, %v248
    %vm250 = vcmp.lt.s32.totalorder %v249, 0
    %v251 = vsub.s32 0, %v249
    %v252 = vsel %vm250, %v251, %v249
    %v253 = vclz %v252
    %v254 = vsub.s32 %v253, 2
    %vm255 = vcmp.gt.s32.totalorder 0, %v254
    %v256 = vsel %vm255, 0, %v254
    %v257 = vsub.s32 32, %v256
    %v258 = vshll.u32 %v249, %v256
    %v259 = vshrl.u32 %v241, %v257
    %v260 = vor.u32 %v258, %v259
    %v261 = vsub.s32 4294967266, %v256
    %v262 = vadd.s32 %v261, 127
    %v263 = vshll.u32 %v262, 23
    %v264 = vor.u32 4788187, %v263
    %v265 = vand.u32 2147483647, %v264
    %v267 = vcvt.s32.f32 %v260
    %v268 = vmul.f32 %v267, %v265
    %v269 = vxor.u32 %v268, 2147483648
    %v270 = vsel %vm187, %v269, %v268
    %v271 = vsub.s32 4, %v247
    %v272 = vsel %vm187, %v271, %v247
    %v273 = vsel %vm186, %v80, %v270
    %v274 = vsel %vm186, 0, %v272
    %v275 = vcosq.f32.pop %v273
    %v276 = vsinq.f32.pop %v273
    %vm277 = vweird.f32 %v80
    %v278 = vadd.s32 %v274, 3
    %v279 = vand.u32 %v278, 3
    %vm280 = vcmp.lt.s32.totalorder %v279, 2
    %vm281 = vcmp.eq.s32.totalorder %v279, 0
    %v282 = vxor.u32 %v276, 2147483648
    %v283 = vsel %vm281, %v275, %v282
    %vm284 = vcmp.eq.s32.totalorder %v279, 2
    %v285 = vxor.u32 %v275, 2147483648
    %v286 = vsel %vm284, %v285, %v276
    %v287 = vsel %vm280, %v283, %v286
    %v288 = vsel %vm277, nan, %v287
    %v289 = vand.u32 2147483647, %v79
    %vm290 = vcmp.le.f32.partialorder %v289, 0.7853982
    %vm291 = vcmp.lt.s32.totalorder %v79, 0
    %v292 = vand.u32 %v79, 2139095040
    %v293 = vshrl.u32 %v292, 23
    %v294 = vsub.s32 %v293, 127
    %v295 = vand.u32 2147483647, %v79
    %v296 = vand.u32 %v295, 8388607
    %v297 = vor.u32 %v296, 8388608
    %v298 = vsub.s32 0, %v297
    %v299 = vadd.s32 %v294, 1
    %vm300 = vcmp.gt.s32.totalorder %v299, 0
    %v301 = vsel %vm300, %v299, 0
    %v302 = vshrl.u32 %v301, 5
    %v303 = vand.u32 %v301, 31
    %v304 = vsub.s32 32, %v303
    %v305 = vshrl.u32 683565275, %v304
    %v306 = vshll.u32 683565275, %v303
    %v307 = vshrl.u32 2475754826, %v304
    %v308 = vor.u32 %v306, %v307
    %v309 = vshll.u32 2475754826, %v303
    %v310 = vshrl.u32 2131351028, %v304
    %v311 = vor.u32 %v309, %v310
    %v312 = vshll.u32 2131351028, %v303
    %v313 = vshrl.u32 2102212464, %v304
    %v314 = vor.u32 %v312, %v313
    %v315 = vshll.u32 2102212464, %v303
    %v316 = vshrl.u32 920167782, %v304
    %v317 = vor.u32 %v315, %v316
    %v318 = vshll.u32 920167782, %v303
    %v319 = vshrl.u32 1326507024, %v304
    %v320 = vor.u32 %v318, %v319
    %vm321 = vcmp.lt.s32.totalorder %v302, 1
    %vm322 = vcmp.lt.s32.totalorder %v302, 2
    %vm323 = vcmp.lt.s32.totalorder %v302, 3
    %vm324 = vcmp.lt.s32.totalorder %v302, 4
    %v325 = vsel %vm321, %v305, %v308
    %v326 = vsel %vm324, %v314, 2102212464
    %v327 = vsel %vm323, %v311, %v326
    %v328 = vsel %vm322, %v325, %v327
    %v329 = vsel %vm321, %v308, %v311
    %v330 = vsel %vm324, %v317, 920167782
    %v331 = vsel %vm323, %v314, %v330
    %v332 = vsel %vm322, %v329, %v331
    %v333 = vsel %vm321, %v311, %v314
    %v334 = vsel %vm324, %v320, 1326507024
    %v335 = vsel %vm323, %v317, %v334
    %v336 = vsel %vm322, %v333, %v335
    %v337 = vshll.u32 %v297, 8
    %v338 = vmul.u32.u64.compose %v337, %v336
    %v339 = vextract.low.u32 %v338
    %v340 = vextract.high.u32 %v338
    %v341 = vmul.u32.u64.compose %v337, %v332
    %v342 = vextract.low.u32 %v341
    %v343 = vextract.high.u32 %v341
    %v344 = vmul.u32 %v337, %v328
    %v345 = vadd.s32 %v340, %v342
    %vm346 = vc.u32 %v340, %v342
    %v347 = vadd.s32 %v343, 1
    %v348 = vsel %vm346, %v347, %v343
    %v349 = vadd.s32 %v344, %v348
    %v350 = vadd.s32 %v349, 536870912
    %v351 = vshrl.u32 %v350, 30
    %v352 = vshll.u32 %v351, 30
    %v353 = vsub.s32 %v349, %v352
    %vm354 = vcmp.lt.s32.totalorder %v353, 0
    %v355 = vsub.s32 0, %v353
    %v356 = vsel %vm354, %v355, %v353
    %v357 = vclz %v356
    %v358 = vsub.s32 %v357, 2
    %vm359 = vcmp.gt.s32.totalorder 0, %v358
    %v360 = vsel %vm359, 0, %v358
    %v361 = vsub.s32 32, %v360
    %v362 = vshll.u32 %v353, %v360
    %v363 = vshrl.u32 %v345, %v361
    %v364 = vor.u32 %v362, %v363
    %v365 = vsub.s32 4294967266, %v360
    %v366 = vadd.s32 %v365, 127
    %v367 = vshll.u32 %v366, 23
    %v368 = vor.u32 4788187, %v367
    %v369 = vand.u32 2147483647, %v368
    %v371 = vcvt.s32.f32 %v364
    %v372 = vmul.f32 %v371, %v369
    %v373 = vxor.u32 %v372, 2147483648
    %v374 = vsel %vm291, %v373, %v372
    %v375 = vsub.s32 4, %v351
    %v376 = vsel %vm291, %v375, %v351
    %v377 = vsel %vm290, %v79, %v374
    %v378 = vsel %vm290, 0, %v376
    %v379 = vcosq.f32.pop %v377
    %v380 = vsinq.f32.pop %v377
    %vm381 = vweird.f32 %v79
    %v382 = vand.u32 %v378, 3
    %vm383 = vcmp.lt.s32.totalorder %v382, 2
    %vm384 = vcmp.eq.s32.totalorder %v382, 0
    %v385 = vxor.u32 %v380, 2147483648
    %v386 = vsel %vm384, %v379, %v385
    %vm387 = vcmp.eq.s32.totalorder %v382, 2
    %v388 = vxor.u32 %v379, 2147483648
    %v389 = vsel %vm387, %v388, %v380
    %v390 = vsel %vm383, %v386, %v389
    %v391 = vsel %vm381, nan, %v390
    %v392 = vand.u32 2147483647, %v80
    %vm393 = vcmp.le.f32.partialorder %v392, 0.7853982
    %vm394 = vcmp.lt.s32.totalorder %v80, 0
    %v395 = vand.u32 %v80, 2139095040
    %v396 = vshrl.u32 %v395, 23
    %v397 = vsub.s32 %v396, 127
    %v398 = vand.u32 2147483647, %v80
    %v399 = vand.u32 %v398, 8388607
    %v400 = vor.u32 %v399, 8388608
    %v401 = vsub.s32 0, %v400
    %v402 = vadd.s32 %v397, 1
    %vm403 = vcmp.gt.s32.totalorder %v402, 0
    %v404 = vsel %vm403, %v402, 0
    %v405 = vshrl.u32 %v404, 5
    %v406 = vand.u32 %v404, 31
    %v407 = vsub.s32 32, %v406
    %v408 = vshrl.u32 683565275, %v407
    %v409 = vshll.u32 683565275, %v406
    %v410 = vshrl.u32 2475754826, %v407
    %v411 = vor.u32 %v409, %v410
    %v412 = vshll.u32 2475754826, %v406
    %v413 = vshrl.u32 2131351028, %v407
    %v414 = vor.u32 %v412, %v413
    %v415 = vshll.u32 2131351028, %v406
    %v416 = vshrl.u32 2102212464, %v407
    %v417 = vor.u32 %v415, %v416
    %v418 = vshll.u32 2102212464, %v406
    %v419 = vshrl.u32 920167782, %v407
    %v420 = vor.u32 %v418, %v419
    %v421 = vshll.u32 920167782, %v406
    %v422 = vshrl.u32 1326507024, %v407
    %v423 = vor.u32 %v421, %v422
    %vm424 = vcmp.lt.s32.totalorder %v405, 1
    %vm425 = vcmp.lt.s32.totalorder %v405, 2
    %vm426 = vcmp.lt.s32.totalorder %v405, 3
    %vm427 = vcmp.lt.s32.totalorder %v405, 4
    %v428 = vsel %vm424, %v408, %v411
    %v429 = vsel %vm427, %v417, 2102212464
    %v430 = vsel %vm426, %v414, %v429
    %v431 = vsel %vm425, %v428, %v430
    %v432 = vsel %vm424, %v411, %v414
    %v433 = vsel %vm427, %v420, 920167782
    %v434 = vsel %vm426, %v417, %v433
    %v435 = vsel %vm425, %v432, %v434
    %v436 = vsel %vm424, %v414, %v417
    %v437 = vsel %vm427, %v423, 1326507024
    %v438 = vsel %vm426, %v420, %v437
    %v439 = vsel %vm425, %v436, %v438
    %v440 = vshll.u32 %v400, 8
    %v441 = vmul.u32.u64.compose %v440, %v439
    %v442 = vextract.low.u32 %v441
    %v443 = vextract.high.u32 %v441
    %v444 = vmul.u32.u64.compose %v440, %v435
    %v445 = vextract.low.u32 %v444
    %v446 = vextract.high.u32 %v444
    %v447 = vmul.u32 %v440, %v431
    %v448 = vadd.s32 %v443, %v445
    %vm449 = vc.u32 %v443, %v445
    %v450 = vadd.s32 %v446, 1
    %v451 = vsel %vm449, %v450, %v446
    %v452 = vadd.s32 %v447, %v451
    %v453 = vadd.s32 %v452, 536870912
    %v454 = vshrl.u32 %v453, 30
    %v455 = vshll.u32 %v454, 30
    %v456 = vsub.s32 %v452, %v455
    %vm457 = vcmp.lt.s32.totalorder %v456, 0
    %v458 = vsub.s32 0, %v456
    %v459 = vsel %vm457, %v458, %v456
    %v460 = vclz %v459
    %v461 = vsub.s32 %v460, 2
    %vm462 = vcmp.gt.s32.totalorder 0, %v461
    %v463 = vsel %vm462, 0, %v461
    %v464 = vsub.s32 32, %v463
    %v465 = vshll.u32 %v456, %v463
    %v466 = vshrl.u32 %v448, %v464
    %v467 = vor.u32 %v465, %v466
    %v468 = vsub.s32 4294967266, %v463
    %v469 = vadd.s32 %v468, 127
    %v470 = vshll.u32 %v469, 23
    %v471 = vor.u32 4788187, %v470
    %v472 = vand.u32 2147483647, %v471
    %v474 = vcvt.s32.f32 %v467
    %v475 = vmul.f32 %v474, %v472
    %v476 = vxor.u32 %v475, 2147483648
    %v477 = vsel %vm394, %v476, %v475
    %v478 = vsub.s32 4, %v454
    %v479 = vsel %vm394, %v478, %v454
    %v480 = vsel %vm393, %v80, %v477
    %v481 = vsel %vm393, 0, %v479
    %v482 = vcosq.f32.pop %v480
    %v483 = vsinq.f32.pop %v480
    %vm484 = vweird.f32 %v80
    %v485 = vand.u32 %v481, 3
    %vm486 = vcmp.lt.s32.totalorder %v485, 2
    %vm487 = vcmp.eq.s32.totalorder %v485, 0
    %v488 = vxor.u32 %v483, 2147483648
    %v489 = vsel %vm487, %v482, %v488
    %vm490 = vcmp.eq.s32.totalorder %v485, 2
    %v491 = vxor.u32 %v482, 2147483648
    %v492 = vsel %vm490, %v491, %v483
    %v493 = vsel %vm486, %v489, %v492
    %v494 = vsel %vm484, nan, %v493
    %v495 = vld [vmem:[%s3] sm:$0xf]
    %v500 = vcombine.low %v184, %v288
    %v501 = vcombine.low %v391, %v494
    %v503 = vunpack.c.l.s4 1966171168
    %v504 = vunpack.c.0.s8 %v503
    %v505 = vlaneseq
    %v506 = vshrl.u32 %v505, 7
    %v507 = vsub.s32 %v504, %v506
    %v508 = vrot.slane %v500, %v507
    %v510 = vunpack.c.l.s4 1966171168
    %v511 = vunpack.c.0.s8 %v510
    %v512 = vlaneseq
    %v513 = vshrl.u32 %v512, 7
    %v514 = vsub.s32 %v511, %v513
    %v515 = vrot.slane %v501, %v514
    %v516 = vcombine.low %v508, %v515
    %v518 = vunpack.c.l.s4 1966171168
    %v519 = vunpack.c.0.s8 %v518
    %v520 = vlaneseq
    %v521 = vshrl.u32 %v520, 7
    %v522 = vsub.s32 %v519, %v521
    %v523 = vrot.slane %v516, %v522
    %v525 = vadd.f32 %v495, %v523
    %v526 = vld [vmem:[#allocation4] sm:$0xff]
    %v527 = vld [vmem:[#allocation4 + $0x8] sm:$0xff]
    %v528 = vld [vmem:[#allocation4 + $0x10] sm:$0xff]
    %v529 = vld [vmem:[#allocation4 + $0x18] sm:$0xff]
    %v530 = vld [vmem:[#allocation4 + $0x20] sm:$0xff]
    %v531 = vld [vmem:[#allocation4 + $0x28] sm:$0xff]
    %v532 = vpack.c.bf16 %v526, %v526
    %v533 = vpack.c.bf16 %v527, %v527
    %v534 = vpack.c.bf16 %v528, %v528
    %v535 = vpack.c.bf16 %v529, %v529
    %v536 = vpack.c.bf16 %v530, %v530
    %v537 = vpack.c.bf16 %v531, %v531
    %v538 = vld [vmem:[#allocation7] sm:$0xff]
    %v539 = vld [vmem:[#allocation7 + $0x8] sm:$0xff]
    %v540 = vld [vmem:[#allocation7 + $0x10] sm:$0xff]
    %v541 = vld [vmem:[#allocation7 + $0x18] sm:$0xff]
    %v542 = vld [vmem:[#allocation7 + $0x20] sm:$0xff]
    %v543 = vld [vmem:[#allocation7 + $0x28] sm:$0xff]
    %v544 = vld [vmem:[#allocation7 + $0x30] sm:$0xff]
    %v545 = vld [vmem:[#allocation7 + $0x38] sm:$0xff]
    %v546 = vld [vmem:[#allocation7 + $0x40] sm:$0xff]
    %v547 = vld [vmem:[#allocation7 + $0x48] sm:$0xff]
    %v548 = vld [vmem:[#allocation7 + $0x50] sm:$0xff]
    %v549 = vld [vmem:[#allocation7 + $0x58] sm:$0xff]
    %v550 = vld [vmem:[#allocation7 + $0x60] sm:$0xff]
    %v551 = vld [vmem:[#allocation7 + $0x68] sm:$0xff]
    %v552 = vld [vmem:[#allocation7 + $0x70] sm:$0xff]
    %v553 = vld [vmem:[#allocation7 + $0x78] sm:$0xff]
    %v554 = vld [vmem:[#allocation7 + $0x80] sm:$0xff]
    %v555 = vld [vmem:[#allocation7 + $0x88] sm:$0xff]
    %v556 = vld [vmem:[#allocation7 + $0x90] sm:$0xff]
    %v557 = vld [vmem:[#allocation7 + $0x98] sm:$0xff]
    %v558 = vld [vmem:[#allocation7 + $0xa0] sm:$0xff]
    %v559 = vld [vmem:[#allocation7 + $0xa8] sm:$0xff]
    %v560 = vld [vmem:[#allocation7 + $0xb0] sm:$0xff]
    %v561 = vld [vmem:[#allocation7 + $0xb8] sm:$0xff]
    %v562 = vld [vmem:[#allocation7 + $0xc0] sm:$0xff]
    %v563 = vld [vmem:[#allocation7 + $0xc8] sm:$0xff]
    %v564 = vld [vmem:[#allocation7 + $0xd0] sm:$0xff]
    %v565 = vld [vmem:[#allocation7 + $0xd8] sm:$0xff]
    %v566 = vld [vmem:[#allocation7 + $0xe0] sm:$0xff]
    %v567 = vld [vmem:[#allocation7 + $0xe8] sm:$0xff]
    %v568 = vld [vmem:[#allocation7 + $0xf0] sm:$0xff]
    %v569 = vld [vmem:[#allocation7 + $0xf8] sm:$0xff]
    %v570 = vld [vmem:[#allocation7 + $0x100] sm:$0xff]
    %v571 = vld [vmem:[#allocation7 + $0x108] sm:$0xff]
    %v572 = vld [vmem:[#allocation7 + $0x110] sm:$0xff]
    %v573 = vld [vmem:[#allocation7 + $0x118] sm:$0xff]
    %v574 = vld [vmem:[#allocation7 + $0x120] sm:$0xff]
    %v575 = vld [vmem:[#allocation7 + $0x128] sm:$0xff]
    %v576 = vld [vmem:[#allocation7 + $0x130] sm:$0xff]
    %v577 = vld [vmem:[#allocation7 + $0x138] sm:$0xff]
    %v578 = vld [vmem:[#allocation7 + $0x140] sm:$0xff]
    %v579 = vld [vmem:[#allocation7 + $0x148] sm:$0xff]
    %v580 = vld [vmem:[#allocation7 + $0x150] sm:$0xff]
    %v581 = vld [vmem:[#allocation7 + $0x158] sm:$0xff]
    %v582 = vld [vmem:[#allocation7 + $0x160] sm:$0xff]
    %v583 = vld [vmem:[#allocation7 + $0x168] sm:$0xff]
    %v584 = vld [vmem:[#allocation7 + $0x170] sm:$0xff]
    %v585 = vld [vmem:[#allocation7 + $0x178] sm:$0xff]
    %v586 = vld [vmem:[#allocation7 + $0x180] sm:$0xff]
    %v587 = vld [vmem:[#allocation7 + $0x188] sm:$0xff]
    %v588 = vld [vmem:[#allocation7 + $0x190] sm:$0xff]
    %v589 = vld [vmem:[#allocation7 + $0x198] sm:$0xff]
    %v590 = vld [vmem:[#allocation7 + $0x1a0] sm:$0xff]
    %v591 = vld [vmem:[#allocation7 + $0x1a8] sm:$0xff]
    %v592 = vld [vmem:[#allocation7 + $0x1b0] sm:$0xff]
    %v593 = vld [vmem:[#allocation7 + $0x1b8] sm:$0xff]
    %v594 = vld [vmem:[#allocation7 + $0x1c0] sm:$0xff]
    %v595 = vld [vmem:[#allocation7 + $0x1c8] sm:$0xff]
    %v596 = vld [vmem:[#allocation7 + $0x1d0] sm:$0xff]
    %v597 = vld [vmem:[#allocation7 + $0x1d8] sm:$0xff]
    %v598 = vld [vmem:[#allocation7 + $0x1e0] sm:$0xff]
    %v599 = vld [vmem:[#allocation7 + $0x1e8] sm:$0xff]
    %v600 = vld [vmem:[#allocation7 + $0x1f0] sm:$0xff]
    %v601 = vld [vmem:[#allocation7 + $0x1f8] sm:$0xff]
    %v602 = vld [vmem:[#allocation7 + $0x200] sm:$0xff]
    %v603 = vld [vmem:[#allocation7 + $0x208] sm:$0xff]
    %v604 = vld [vmem:[#allocation7 + $0x210] sm:$0xff]
    %v605 = vld [vmem:[#allocation7 + $0x218] sm:$0xff]
    %v606 = vld [vmem:[#allocation7 + $0x220] sm:$0xff]
    %v607 = vld [vmem:[#allocation7 + $0x228] sm:$0xff]
    %v608 = vld [vmem:[#allocation7 + $0x230] sm:$0xff]
    %v609 = vld [vmem:[#allocation7 + $0x238] sm:$0xff]
    %v610 = vld [vmem:[#allocation7 + $0x240] sm:$0xff]
    %v611 = vld [vmem:[#allocation7 + $0x248] sm:$0xff]
    %v612 = vld [vmem:[#allocation7 + $0x250] sm:$0xff]
    %v613 = vld [vmem:[#allocation7 + $0x258] sm:$0xff]
    %v614 = vld [vmem:[#allocation7 + $0x260] sm:$0xff]
    %v615 = vld [vmem:[#allocation7 + $0x268] sm:$0xff]
    %v616 = vld [vmem:[#allocation7 + $0x270] sm:$0xff]
    %v617 = vld [vmem:[#allocation7 + $0x278] sm:$0xff]
    %v618 = vld [vmem:[#allocation7 + $0x280] sm:$0xff]
    %v619 = vld [vmem:[#allocation7 + $0x288] sm:$0xff]
    %v620 = vld [vmem:[#allocation7 + $0x290] sm:$0xff]
    %v621 = vld [vmem:[#allocation7 + $0x298] sm:$0xff]
    %v622 = vld [vmem:[#allocation7 + $0x2a0] sm:$0xff]
    %v623 = vld [vmem:[#allocation7 + $0x2a8] sm:$0xff]
    %v624 = vld [vmem:[#allocation7 + $0x2b0] sm:$0xff]
    %v625 = vld [vmem:[#allocation7 + $0x2b8] sm:$0xff]
    %v626 = vld [vmem:[#allocation7 + $0x2c0] sm:$0xff]
    %v627 = vld [vmem:[#allocation7 + $0x2c8] sm:$0xff]
    %v628 = vld [vmem:[#allocation7 + $0x2d0] sm:$0xff]
    %v629 = vld [vmem:[#allocation7 + $0x2d8] sm:$0xff]
    %v630 = vld [vmem:[#allocation7 + $0x2e0] sm:$0xff]
    %v631 = vld [vmem:[#allocation7 + $0x2e8] sm:$0xff]
    %v632 = vld [vmem:[#allocation7 + $0x2f0] sm:$0xff]
    %v633 = vld [vmem:[#allocation7 + $0x2f8] sm:$0xff]
    %v634 = vld [vmem:[#allocation7 + $0x300] sm:$0xff]
    %v635 = vld [vmem:[#allocation7 + $0x308] sm:$0xff]
    %v636 = vld [vmem:[#allocation7 + $0x310] sm:$0xff]
    %v637 = vld [vmem:[#allocation7 + $0x318] sm:$0xff]
    %v638 = vld [vmem:[#allocation7 + $0x320] sm:$0xff]
    %v639 = vld [vmem:[#allocation7 + $0x328] sm:$0xff]
    %v640 = vld [vmem:[#allocation7 + $0x330] sm:$0xff]
    %v641 = vld [vmem:[#allocation7 + $0x338] sm:$0xff]
    %v642 = vld [vmem:[#allocation7 + $0x340] sm:$0xff]
    %v643 = vld [vmem:[#allocation7 + $0x348] sm:$0xff]
    %v644 = vld [vmem:[#allocation7 + $0x350] sm:$0xff]
    %v645 = vld [vmem:[#allocation7 + $0x358] sm:$0xff]
    %v646 = vld [vmem:[#allocation7 + $0x360] sm:$0xff]
    %v647 = vld [vmem:[#allocation7 + $0x368] sm:$0xff]
    %v648 = vld [vmem:[#allocation7 + $0x370] sm:$0xff]
    %v649 = vld [vmem:[#allocation7 + $0x378] sm:$0xff]
    %v650 = vld [vmem:[#allocation7 + $0x380] sm:$0xff]
    %v651 = vld [vmem:[#allocation7 + $0x388] sm:$0xff]
    %v652 = vld [vmem:[#allocation7 + $0x390] sm:$0xff]
    %v653 = vld [vmem:[#allocation7 + $0x398] sm:$0xff]
    %v654 = vld [vmem:[#allocation7 + $0x3a0] sm:$0xff]
    %v655 = vld [vmem:[#allocation7 + $0x3a8] sm:$0xff]
    %v656 = vld [vmem:[#allocation7 + $0x3b0] sm:$0xff]
    %v657 = vld [vmem:[#allocation7 + $0x3b8] sm:$0xff]
    %v658 = vld [vmem:[#allocation7 + $0x3c0] sm:$0xff]
    %v659 = vld [vmem:[#allocation7 + $0x3c8] sm:$0xff]
    %v660 = vld [vmem:[#allocation7 + $0x3d0] sm:$0xff]
    %v661 = vld [vmem:[#allocation7 + $0x3d8] sm:$0xff]
    %v662 = vld [vmem:[#allocation7 + $0x3e0] sm:$0xff]
    %v663 = vld [vmem:[#allocation7 + $0x3e8] sm:$0xff]
    %v664 = vld [vmem:[#allocation7 + $0x3f0] sm:$0xff]
    %v665 = vld [vmem:[#allocation7 + $0x3f8] sm:$0xff]
    %v666 = vld [vmem:[#allocation7 + $0x400] sm:$0xff]
    %v667 = vld [vmem:[#allocation7 + $0x408] sm:$0xff]
    %v668 = vld [vmem:[#allocation7 + $0x410] sm:$0xff]
    %v669 = vld [vmem:[#allocation7 + $0x418] sm:$0xff]
    %v670 = vld [vmem:[#allocation7 + $0x420] sm:$0xff]
    %v671 = vld [vmem:[#allocation7 + $0x428] sm:$0xff]
    %v672 = vld [vmem:[#allocation7 + $0x430] sm:$0xff]
    %v673 = vld [vmem:[#allocation7 + $0x438] sm:$0xff]
    %v674 = vld [vmem:[#allocation7 + $0x440] sm:$0xff]
    %v675 = vld [vmem:[#allocation7 + $0x448] sm:$0xff]
    %v676 = vld [vmem:[#allocation7 + $0x450] sm:$0xff]
    %v677 = vld [vmem:[#allocation7 + $0x458] sm:$0xff]
    %v678 = vld [vmem:[#allocation7 + $0x460] sm:$0xff]
    %v679 = vld [vmem:[#allocation7 + $0x468] sm:$0xff]
    %v680 = vld [vmem:[#allocation7 + $0x470] sm:$0xff]
    %v681 = vld [vmem:[#allocation7 + $0x478] sm:$0xff]
    %v682 = vld [vmem:[#allocation7 + $0x480] sm:$0xff]
    %v683 = vld [vmem:[#allocation7 + $0x488] sm:$0xff]
    %v684 = vld [vmem:[#allocation7 + $0x490] sm:$0xff]
    %v685 = vld [vmem:[#allocation7 + $0x498] sm:$0xff]
    %v686 = vld [vmem:[#allocation7 + $0x4a0] sm:$0xff]
    %v687 = vld [vmem:[#allocation7 + $0x4a8] sm:$0xff]
    %v688 = vld [vmem:[#allocation7 + $0x4b0] sm:$0xff]
    %v689 = vld [vmem:[#allocation7 + $0x4b8] sm:$0xff]
    %v690 = vld [vmem:[#allocation7 + $0x4c0] sm:$0xff]
    %v691 = vld [vmem:[#allocation7 + $0x4c8] sm:$0xff]
    %v692 = vld [vmem:[#allocation7 + $0x4d0] sm:$0xff]
    %v693 = vld [vmem:[#allocation7 + $0x4d8] sm:$0xff]
    %v694 = vld [vmem:[#allocation7 + $0x4e0] sm:$0xff]
    %v695 = vld [vmem:[#allocation7 + $0x4e8] sm:$0xff]
    %v696 = vld [vmem:[#allocation7 + $0x4f0] sm:$0xff]
    %v697 = vld [vmem:[#allocation7 + $0x4f8] sm:$0xff]
    %v698 = vld [vmem:[#allocation7 + $0x500] sm:$0xff]
    %v699 = vld [vmem:[#allocation7 + $0x508] sm:$0xff]
    %v700 = vld [vmem:[#allocation7 + $0x510] sm:$0xff]
    %v701 = vld [vmem:[#allocation7 + $0x518] sm:$0xff]
    %v702 = vld [vmem:[#allocation7 + $0x520] sm:$0xff]
    %v703 = vld [vmem:[#allocation7 + $0x528] sm:$0xff]
    %v704 = vld [vmem:[#allocation7 + $0x530] sm:$0xff]
    %v705 = vld [vmem:[#allocation7 + $0x538] sm:$0xff]
    %v706 = vld [vmem:[#allocation7 + $0x540] sm:$0xff]
    %v707 = vld [vmem:[#allocation7 + $0x548] sm:$0xff]
    %v708 = vld [vmem:[#allocation7 + $0x550] sm:$0xff]
    %v709 = vld [vmem:[#allocation7 + $0x558] sm:$0xff]
    %v710 = vld [vmem:[#allocation7 + $0x560] sm:$0xff]
    %v711 = vld [vmem:[#allocation7 + $0x568] sm:$0xff]
    %v712 = vld [vmem:[#allocation7 + $0x570] sm:$0xff]
    %v713 = vld [vmem:[#allocation7 + $0x578] sm:$0xff]
    %v714 = vld [vmem:[#allocation7 + $0x580] sm:$0xff]
    %v715 = vld [vmem:[#allocation7 + $0x588] sm:$0xff]
    %v716 = vld [vmem:[#allocation7 + $0x590] sm:$0xff]
    %v717 = vld [vmem:[#allocation7 + $0x598] sm:$0xff]
    %v718 = vld [vmem:[#allocation7 + $0x5a0] sm:$0xff]
    %v719 = vld [vmem:[#allocation7 + $0x5a8] sm:$0xff]
    %v720 = vld [vmem:[#allocation7 + $0x5b0] sm:$0xff]
    %v721 = vld [vmem:[#allocation7 + $0x5b8] sm:$0xff]
    %v722 = vld [vmem:[#allocation7 + $0x5c0] sm:$0xff]
    %v723 = vld [vmem:[#allocation7 + $0x5c8] sm:$0xff]
    %v724 = vld [vmem:[#allocation7 + $0x5d0] sm:$0xff]
    %v725 = vld [vmem:[#allocation7 + $0x5d8] sm:$0xff]
    %v726 = vld [vmem:[#allocation7 + $0x5e0] sm:$0xff]
    %v727 = vld [vmem:[#allocation7 + $0x5e8] sm:$0xff]
    %v728 = vld [vmem:[#allocation7 + $0x5f0] sm:$0xff]
    %v729 = vld [vmem:[#allocation7 + $0x5f8] sm:$0xff]
    %v731 = vlaneseq
    %v732 = vshrl.u32 %v731, 7
    %v733 = vsub.s32 0, %v732
    %v734 = vrot.slane %v525, %v733
    %v735 = vlaneseq
    %v736 = vshrl.u32 %v735, 7
    %v737 = vsub.s32 1, %v736
    %v738 = vrot.slane %v525, %v737
    %v739 = vlaneseq
    %v740 = vshrl.u32 %v739, 7
    %v741 = vsub.s32 2, %v740
    %v742 = vrot.slane %v525, %v741
    %v743 = vlaneseq
    %v744 = vshrl.u32 %v743, 7
    %v745 = vsub.s32 3, %v744
    %v746 = vrot.slane %v525, %v745
    %v943 = vunpack.c.l.b16 %v538
    %v944 = vunpack.c.h.b16 %v538
    %v945 = vunpack.c.l.b16 %v539
    %v946 = vunpack.c.h.b16 %v539
    %v947 = vunpack.c.l.b16 %v540
    %v948 = vunpack.c.h.b16 %v540
    %v949 = vunpack.c.l.b16 %v541
    %v950 = vunpack.c.h.b16 %v541
    %v951 = vunpack.c.l.b16 %v542
    %v952 = vunpack.c.h.b16 %v542
    %v953 = vunpack.c.l.b16 %v543
    %v954 = vunpack.c.h.b16 %v543
    %v955 = vunpack.c.l.b16 %v544
    %v956 = vunpack.c.h.b16 %v544
    %v957 = vunpack.c.l.b16 %v545
    %v958 = vunpack.c.h.b16 %v545
    %v959 = vunpack.c.l.b16 %v546
    %v960 = vunpack.c.h.b16 %v546
    %v961 = vunpack.c.l.b16 %v547
    %v962 = vunpack.c.h.b16 %v547
    %v963 = vunpack.c.l.b16 %v548
    %v964 = vunpack.c.h.b16 %v548
    %v965 = vunpack.c.l.b16 %v549
    %v966 = vunpack.c.h.b16 %v549
    %v967 = vunpack.c.l.b16 %v550
    %v968 = vunpack.c.h.b16 %v550
    %v969 = vunpack.c.l.b16 %v551
    %v970 = vunpack.c.h.b16 %v551
    %v971 = vunpack.c.l.b16 %v552
    %v972 = vunpack.c.h.b16 %v552
    %v973 = vunpack.c.l.b16 %v553
    %v974 = vunpack.c.h.b16 %v553
    %v975 = vunpack.c.l.b16 %v554
    %v976 = vunpack.c.h.b16 %v554
    %v977 = vunpack.c.l.b16 %v555
    %v978 = vunpack.c.h.b16 %v555
    %v979 = vunpack.c.l.b16 %v556
    %v980 = vunpack.c.h.b16 %v556
    %v981 = vunpack.c.l.b16 %v557
    %v982 = vunpack.c.h.b16 %v557
    %v983 = vunpack.c.l.b16 %v558
    %v984 = vunpack.c.h.b16 %v558
    %v985 = vunpack.c.l.b16 %v559
    %v986 = vunpack.c.h.b16 %v559
    %v987 = vunpack.c.l.b16 %v560
    %v988 = vunpack.c.h.b16 %v560
    %v989 = vunpack.c.l.b16 %v561
    %v990 = vunpack.c.h.b16 %v561
    %v991 = vunpack.c.l.b16 %v562
    %v992 = vunpack.c.h.b16 %v562
    %v993 = vunpack.c.l.b16 %v563
    %v994 = vunpack.c.h.b16 %v563
    %v995 = vunpack.c.l.b16 %v564
    %v996 = vunpack.c.h.b16 %v564
    %v997 = vunpack.c.l.b16 %v565
    %v998 = vunpack.c.h.b16 %v565
    %v999 = vunpack.c.l.b16 %v566
    %v1000 = vunpack.c.h.b16 %v566
    %v1001 = vunpack.c.l.b16 %v567
    %v1002 = vunpack.c.h.b16 %v567
    %v1003 = vunpack.c.l.b16 %v568
    %v1004 = vunpack.c.h.b16 %v568
    %v1005 = vunpack.c.l.b16 %v569
    %v1006 = vunpack.c.h.b16 %v569
    %v1007 = vunpack.c.l.b16 %v570
    %v1008 = vunpack.c.h.b16 %v570
    %v1009 = vunpack.c.l.b16 %v571
    %v1010 = vunpack.c.h.b16 %v571
    %v1011 = vunpack.c.l.b16 %v572
    %v1012 = vunpack.c.h.b16 %v572
    %v1013 = vunpack.c.l.b16 %v573
    %v1014 = vunpack.c.h.b16 %v573
    %v1015 = vunpack.c.l.b16 %v574
    %v1016 = vunpack.c.h.b16 %v574
    %v1017 = vunpack.c.l.b16 %v575
    %v1018 = vunpack.c.h.b16 %v575
    %v1019 = vunpack.c.l.b16 %v576
    %v1020 = vunpack.c.h.b16 %v576
    %v1021 = vunpack.c.l.b16 %v577
    %v1022 = vunpack.c.h.b16 %v577
    %v1023 = vunpack.c.l.b16 %v578
    %v1024 = vunpack.c.h.b16 %v578
    %v1025 = vunpack.c.l.b16 %v579
    %v1026 = vunpack.c.h.b16 %v579
    %v1027 = vunpack.c.l.b16 %v580
    %v1028 = vunpack.c.h.b16 %v580
    %v1029 = vunpack.c.l.b16 %v581
    %v1030 = vunpack.c.h.b16 %v581
    %v1031 = vunpack.c.l.b16 %v582
    %v1032 = vunpack.c.h.b16 %v582
    %v1033 = vunpack.c.l.b16 %v583
    %v1034 = vunpack.c.h.b16 %v583
    %v1035 = vunpack.c.l.b16 %v584
    %v1036 = vunpack.c.h.b16 %v584
    %v1037 = vunpack.c.l.b16 %v585
    %v1038 = vunpack.c.h.b16 %v585
    %v1039 = vunpack.c.l.b16 %v586
    %v1040 = vunpack.c.h.b16 %v586
    %v1041 = vunpack.c.l.b16 %v587
    %v1042 = vunpack.c.h.b16 %v587
    %v1043 = vunpack.c.l.b16 %v588
    %v1044 = vunpack.c.h.b16 %v588
    %v1045 = vunpack.c.l.b16 %v589
    %v1046 = vunpack.c.h.b16 %v589
    %v1047 = vunpack.c.l.b16 %v590
    %v1048 = vunpack.c.h.b16 %v590
    %v1049 = vunpack.c.l.b16 %v591
    %v1050 = vunpack.c.h.b16 %v591
    %v1051 = vunpack.c.l.b16 %v592
    %v1052 = vunpack.c.h.b16 %v592
    %v1053 = vunpack.c.l.b16 %v593
    %v1054 = vunpack.c.h.b16 %v593
    %v1055 = vunpack.c.l.b16 %v594
    %v1056 = vunpack.c.h.b16 %v594
    %v1057 = vunpack.c.l.b16 %v595
    %v1058 = vunpack.c.h.b16 %v595
    %v1059 = vunpack.c.l.b16 %v596
    %v1060 = vunpack.c.h.b16 %v596
    %v1061 = vunpack.c.l.b16 %v597
    %v1062 = vunpack.c.h.b16 %v597
    %v1063 = vunpack.c.l.b16 %v598
    %v1064 = vunpack.c.h.b16 %v598
    %v1065 = vunpack.c.l.b16 %v599
    %v1066 = vunpack.c.h.b16 %v599
    %v1067 = vunpack.c.l.b16 %v600
    %v1068 = vunpack.c.h.b16 %v600
    %v1069 = vunpack.c.l.b16 %v601
    %v1070 = vunpack.c.h.b16 %v601
    %v1071 = vunpack.c.l.b16 %v602
    %v1072 = vunpack.c.h.b16 %v602
    %v1073 = vunpack.c.l.b16 %v603
    %v1074 = vunpack.c.h.b16 %v603
    %v1075 = vunpack.c.l.b16 %v604
    %v1076 = vunpack.c.h.b16 %v604
    %v1077 = vunpack.c.l.b16 %v605
    %v1078 = vunpack.c.h.b16 %v605
    %v1079 = vunpack.c.l.b16 %v606
    %v1080 = vunpack.c.h.b16 %v606
    %v1081 = vunpack.c.l.b16 %v607
    %v1082 = vunpack.c.h.b16 %v607
    %v1083 = vunpack.c.l.b16 %v608
    %v1084 = vunpack.c.h.b16 %v608
    %v1085 = vunpack.c.l.b16 %v609
    %v1086 = vunpack.c.h.b16 %v609
    %v1087 = vunpack.c.l.b16 %v610
    %v1088 = vunpack.c.h.b16 %v610
    %v1089 = vunpack.c.l.b16 %v611
    %v1090 = vunpack.c.h.b16 %v611
    %v1091 = vunpack.c.l.b16 %v612
    %v1092 = vunpack.c.h.b16 %v612
    %v1093 = vunpack.c.l.b16 %v613
    %v1094 = vunpack.c.h.b16 %v613
    %v1095 = vunpack.c.l.b16 %v614
    %v1096 = vunpack.c.h.b16 %v614
    %v1097 = vunpack.c.l.b16 %v615
    %v1098 = vunpack.c.h.b16 %v615
    %v1099 = vunpack.c.l.b16 %v616
    %v1100 = vunpack.c.h.b16 %v616
    %v1101 = vunpack.c.l.b16 %v617
    %v1102 = vunpack.c.h.b16 %v617
    %v1103 = vunpack.c.l.b16 %v618
    %v1104 = vunpack.c.h.b16 %v618
    %v1105 = vunpack.c.l.b16 %v619
    %v1106 = vunpack.c.h.b16 %v619
    %v1107 = vunpack.c.l.b16 %v620
    %v1108 = vunpack.c.h.b16 %v620
    %v1109 = vunpack.c.l.b16 %v621
    %v1110 = vunpack.c.h.b16 %v621
    %v1111 = vunpack.c.l.b16 %v622
    %v1112 = vunpack.c.h.b16 %v622
    %v1113 = vunpack.c.l.b16 %v623
    %v1114 = vunpack.c.h.b16 %v623
    %v1115 = vunpack.c.l.b16 %v624
    %v1116 = vunpack.c.h.b16 %v624
    %v1117 = vunpack.c.l.b16 %v625
    %v1118 = vunpack.c.h.b16 %v625
    %v1119 = vunpack.c.l.b16 %v626
    %v1120 = vunpack.c.h.b16 %v626
    %v1121 = vunpack.c.l.b16 %v627
    %v1122 = vunpack.c.h.b16 %v627
    %v1123 = vunpack.c.l.b16 %v628
    %v1124 = vunpack.c.h.b16 %v628
    %v1125 = vunpack.c.l.b16 %v629
    %v1126 = vunpack.c.h.b16 %v629
    %v1127 = vunpack.c.l.b16 %v630
    %v1128 = vunpack.c.h.b16 %v630
    %v1129 = vunpack.c.l.b16 %v631
    %v1130 = vunpack.c.h.b16 %v631
    %v1131 = vunpack.c.l.b16 %v632
    %v1132 = vunpack.c.h.b16 %v632
    %v1133 = vunpack.c.l.b16 %v633
    %v1134 = vunpack.c.h.b16 %v633
    %v1135 = vunpack.c.l.b16 %v634
    %v1136 = vunpack.c.h.b16 %v634
    %v1137 = vunpack.c.l.b16 %v635
    %v1138 = vunpack.c.h.b16 %v635
    %v1139 = vunpack.c.l.b16 %v636
    %v1140 = vunpack.c.h.b16 %v636
    %v1141 = vunpack.c.l.b16 %v637
    %v1142 = vunpack.c.h.b16 %v637
    %v1143 = vunpack.c.l.b16 %v638
    %v1144 = vunpack.c.h.b16 %v638
    %v1145 = vunpack.c.l.b16 %v639
    %v1146 = vunpack.c.h.b16 %v639
    %v1147 = vunpack.c.l.b16 %v640
    %v1148 = vunpack.c.h.b16 %v640
    %v1149 = vunpack.c.l.b16 %v641
    %v1150 = vunpack.c.h.b16 %v641
    %v1151 = vunpack.c.l.b16 %v642
    %v1152 = vunpack.c.h.b16 %v642
    %v1153 = vunpack.c.l.b16 %v643
    %v1154 = vunpack.c.h.b16 %v643
    %v1155 = vunpack.c.l.b16 %v644
    %v1156 = vunpack.c.h.b16 %v644
    %v1157 = vunpack.c.l.b16 %v645
    %v1158 = vunpack.c.h.b16 %v645
    %v1159 = vunpack.c.l.b16 %v646
    %v1160 = vunpack.c.h.b16 %v646
    %v1161 = vunpack.c.l.b16 %v647
    %v1162 = vunpack.c.h.b16 %v647
    %v1163 = vunpack.c.l.b16 %v648
    %v1164 = vunpack.c.h.b16 %v648
    %v1165 = vunpack.c.l.b16 %v649
    %v1166 = vunpack.c.h.b16 %v649
    %v1167 = vunpack.c.l.b16 %v650
    %v1168 = vunpack.c.h.b16 %v650
    %v1169 = vunpack.c.l.b16 %v651
    %v1170 = vunpack.c.h.b16 %v651
    %v1171 = vunpack.c.l.b16 %v652
    %v1172 = vunpack.c.h.b16 %v652
    %v1173 = vunpack.c.l.b16 %v653
    %v1174 = vunpack.c.h.b16 %v653
    %v1175 = vunpack.c.l.b16 %v654
    %v1176 = vunpack.c.h.b16 %v654
    %v1177 = vunpack.c.l.b16 %v655
    %v1178 = vunpack.c.h.b16 %v655
    %v1179 = vunpack.c.l.b16 %v656
    %v1180 = vunpack.c.h.b16 %v656
    %v1181 = vunpack.c.l.b16 %v657
    %v1182 = vunpack.c.h.b16 %v657
    %v1183 = vunpack.c.l.b16 %v658
    %v1184 = vunpack.c.h.b16 %v658
    %v1185 = vunpack.c.l.b16 %v659
    %v1186 = vunpack.c.h.b16 %v659
    %v1187 = vunpack.c.l.b16 %v660
    %v1188 = vunpack.c.h.b16 %v660
    %v1189 = vunpack.c.l.b16 %v661
    %v1190 = vunpack.c.h.b16 %v661
    %v1191 = vunpack.c.l.b16 %v662
    %v1192 = vunpack.c.h.b16 %v662
    %v1193 = vunpack.c.l.b16 %v663
    %v1194 = vunpack.c.h.b16 %v663
    %v1195 = vunpack.c.l.b16 %v664
    %v1196 = vunpack.c.h.b16 %v664
    %v1197 = vunpack.c.l.b16 %v665
    %v1198 = vunpack.c.h.b16 %v665
    %v1199 = vunpack.c.l.b16 %v666
    %v1200 = vunpack.c.h.b16 %v666
    %v1201 = vunpack.c.l.b16 %v667
    %v1202 = vunpack.c.h.b16 %v667
    %v1203 = vunpack.c.l.b16 %v668
    %v1204 = vunpack.c.h.b16 %v668
    %v1205 = vunpack.c.l.b16 %v669
    %v1206 = vunpack.c.h.b16 %v669
    %v1207 = vunpack.c.l.b16 %v670
    %v1208 = vunpack.c.h.b16 %v670
    %v1209 = vunpack.c.l.b16 %v671
    %v1210 = vunpack.c.h.b16 %v671
    %v1211 = vunpack.c.l.b16 %v672
    %v1212 = vunpack.c.h.b16 %v672
    %v1213 = vunpack.c.l.b16 %v673
    %v1214 = vunpack.c.h.b16 %v673
    %v1215 = vunpack.c.l.b16 %v674
    %v1216 = vunpack.c.h.b16 %v674
    %v1217 = vunpack.c.l.b16 %v675
    %v1218 = vunpack.c.h.b16 %v675
    %v1219 = vunpack.c.l.b16 %v676
    %v1220 = vunpack.c.h.b16 %v676
    %v1221 = vunpack.c.l.b16 %v677
    %v1222 = vunpack.c.h.b16 %v677
    %v1223 = vunpack.c.l.b16 %v678
    %v1224 = vunpack.c.h.b16 %v678
    %v1225 = vunpack.c.l.b16 %v679
    %v1226 = vunpack.c.h.b16 %v679
    %v1227 = vunpack.c.l.b16 %v680
    %v1228 = vunpack.c.h.b16 %v680
    %v1229 = vunpack.c.l.b16 %v681
    %v1230 = vunpack.c.h.b16 %v681
    %v1231 = vunpack.c.l.b16 %v682
    %v1232 = vunpack.c.h.b16 %v682
    %v1233 = vunpack.c.l.b16 %v683
    %v1234 = vunpack.c.h.b16 %v683
    %v1235 = vunpack.c.l.b16 %v684
    %v1236 = vunpack.c.h.b16 %v684
    %v1237 = vunpack.c.l.b16 %v685
    %v1238 = vunpack.c.h.b16 %v685
    %v1239 = vunpack.c.l.b16 %v686
    %v1240 = vunpack.c.h.b16 %v686
    %v1241 = vunpack.c.l.b16 %v687
    %v1242 = vunpack.c.h.b16 %v687
    %v1243 = vunpack.c.l.b16 %v688
    %v1244 = vunpack.c.h.b16 %v688
    %v1245 = vunpack.c.l.b16 %v689
    %v1246 = vunpack.c.h.b16 %v689
    %v1247 = vunpack.c.l.b16 %v690
    %v1248 = vunpack.c.h.b16 %v690
    %v1249 = vunpack.c.l.b16 %v691
    %v1250 = vunpack.c.h.b16 %v691
    %v1251 = vunpack.c.l.b16 %v692
    %v1252 = vunpack.c.h.b16 %v692
    %v1253 = vunpack.c.l.b16 %v693
    %v1254 = vunpack.c.h.b16 %v693
    %v1255 = vunpack.c.l.b16 %v694
    %v1256 = vunpack.c.h.b16 %v694
    %v1257 = vunpack.c.l.b16 %v695
    %v1258 = vunpack.c.h.b16 %v695
    %v1259 = vunpack.c.l.b16 %v696
    %v1260 = vunpack.c.h.b16 %v696
    %v1261 = vunpack.c.l.b16 %v697
    %v1262 = vunpack.c.h.b16 %v697
    %v1263 = vunpack.c.l.b16 %v698
    %v1264 = vunpack.c.h.b16 %v698
    %v1265 = vunpack.c.l.b16 %v699
    %v1266 = vunpack.c.h.b16 %v699
    %v1267 = vunpack.c.l.b16 %v700
    %v1268 = vunpack.c.h.b16 %v700
    %v1269 = vunpack.c.l.b16 %v701
    %v1270 = vunpack.c.h.b16 %v701
    %v1271 = vunpack.c.l.b16 %v702
    %v1272 = vunpack.c.h.b16 %v702
    %v1273 = vunpack.c.l.b16 %v703
    %v1274 = vunpack.c.h.b16 %v703
    %v1275 = vunpack.c.l.b16 %v704
    %v1276 = vunpack.c.h.b16 %v704
    %v1277 = vunpack.c.l.b16 %v705
    %v1278 = vunpack.c.h.b16 %v705
    %v1279 = vunpack.c.l.b16 %v706
    %v1280 = vunpack.c.h.b16 %v706
    %v1281 = vunpack.c.l.b16 %v707
    %v1282 = vunpack.c.h.b16 %v707
    %v1283 = vunpack.c.l.b16 %v708
    %v1284 = vunpack.c.h.b16 %v708
    %v1285 = vunpack.c.l.b16 %v709
    %v1286 = vunpack.c.h.b16 %v709
    %v1287 = vunpack.c.l.b16 %v710
    %v1288 = vunpack.c.h.b16 %v710
    %v1289 = vunpack.c.l.b16 %v711
    %v1290 = vunpack.c.h.b16 %v711
    %v1291 = vunpack.c.l.b16 %v712
    %v1292 = vunpack.c.h.b16 %v712
    %v1293 = vunpack.c.l.b16 %v713
    %v1294 = vunpack.c.h.b16 %v713
    %v1295 = vunpack.c.l.b16 %v714
    %v1296 = vunpack.c.h.b16 %v714
    %v1297 = vunpack.c.l.b16 %v715
    %v1298 = vunpack.c.h.b16 %v715
    %v1299 = vunpack.c.l.b16 %v716
    %v1300 = vunpack.c.h.b16 %v716
    %v1301 = vunpack.c.l.b16 %v717
    %v1302 = vunpack.c.h.b16 %v717
    %v1303 = vunpack.c.l.b16 %v718
    %v1304 = vunpack.c.h.b16 %v718
    %v1305 = vunpack.c.l.b16 %v719
    %v1306 = vunpack.c.h.b16 %v719
    %v1307 = vunpack.c.l.b16 %v720
    %v1308 = vunpack.c.h.b16 %v720
    %v1309 = vunpack.c.l.b16 %v721
    %v1310 = vunpack.c.h.b16 %v721
    %v1311 = vunpack.c.l.b16 %v722
    %v1312 = vunpack.c.h.b16 %v722
    %v1313 = vunpack.c.l.b16 %v723
    %v1314 = vunpack.c.h.b16 %v723
    %v1315 = vunpack.c.l.b16 %v724
    %v1316 = vunpack.c.h.b16 %v724
    %v1317 = vunpack.c.l.b16 %v725
    %v1318 = vunpack.c.h.b16 %v725
    %v1319 = vunpack.c.l.b16 %v726
    %v1320 = vunpack.c.h.b16 %v726
    %v1321 = vunpack.c.l.b16 %v727
    %v1322 = vunpack.c.h.b16 %v727
    %v1323 = vunpack.c.l.b16 %v728
    %v1324 = vunpack.c.h.b16 %v728
    %v1325 = vunpack.c.l.b16 %v729
    %v1326 = vunpack.c.h.b16 %v729
    %v1327 = vpack.c.b16 %v947, %v943
    %v1328 = vpack.c.b16 %v948, %v944
    %v1329 = vpack.c.b16 %v949, %v945
    %v1330 = vpack.c.b16 %v950, %v946
    %v1331 = vpack.c.b16 %v955, %v951
    %v1332 = vpack.c.b16 %v956, %v952
    %v1333 = vpack.c.b16 %v957, %v953
    %v1334 = vpack.c.b16 %v958, %v954
    %v1335 = vpack.c.b16 %v963, %v959
    %v1336 = vpack.c.b16 %v964, %v960
    %v1337 = vpack.c.b16 %v965, %v961
    %v1338 = vpack.c.b16 %v966, %v962
    %v1339 = vpack.c.b16 %v971, %v967
    %v1340 = vpack.c.b16 %v972, %v968
    %v1341 = vpack.c.b16 %v973, %v969
    %v1342 = vpack.c.b16 %v974, %v970
    %v1343 = vpack.c.b16 %v979, %v975
    %v1344 = vpack.c.b16 %v980, %v976
    %v1345 = vpack.c.b16 %v981, %v977
    %v1346 = vpack.c.b16 %v982, %v978
    %v1347 = vpack.c.b16 %v987, %v983
    %v1348 = vpack.c.b16 %v988, %v984
    %v1349 = vpack.c.b16 %v989, %v985
    %v1350 = vpack.c.b16 %v990, %v986
    %v1351 = vpack.c.b16 %v995, %v991
    %v1352 = vpack.c.b16 %v996, %v992
    %v1353 = vpack.c.b16 %v997, %v993
    %v1354 = vpack.c.b16 %v998, %v994
    %v1355 = vpack.c.b16 %v1003, %v999
    %v1356 = vpack.c.b16 %v1004, %v1000
    %v1357 = vpack.c.b16 %v1005, %v1001
    %v1358 = vpack.c.b16 %v1006, %v1002
    %v1359 = vpack.c.b16 %v1011, %v1007
    %v1360 = vpack.c.b16 %v1012, %v1008
    %v1361 = vpack.c.b16 %v1013, %v1009
    %v1362 = vpack.c.b16 %v1014, %v1010
    %v1363 = vpack.c.b16 %v1019, %v1015
    %v1364 = vpack.c.b16 %v1020, %v1016
    %v1365 = vpack.c.b16 %v1021, %v1017
    %v1366 = vpack.c.b16 %v1022, %v1018
    %v1367 = vpack.c.b16 %v1027, %v1023
    %v1368 = vpack.c.b16 %v1028, %v1024
    %v1369 = vpack.c.b16 %v1029, %v1025
    %v1370 = vpack.c.b16 %v1030, %v1026
    %v1371 = vpack.c.b16 %v1035, %v1031
    %v1372 = vpack.c.b16 %v1036, %v1032
    %v1373 = vpack.c.b16 %v1037, %v1033
    %v1374 = vpack.c.b16 %v1038, %v1034
    %v1375 = vpack.c.b16 %v1043, %v1039
    %v1376 = vpack.c.b16 %v1044, %v1040
    %v1377 = vpack.c.b16 %v1045, %v1041
    %v1378 = vpack.c.b16 %v1046, %v1042
    %v1379 = vpack.c.b16 %v1051, %v1047
    %v1380 = vpack.c.b16 %v1052, %v1048
    %v1381 = vpack.c.b16 %v1053, %v1049
    %v1382 = vpack.c.b16 %v1054, %v1050
    %v1383 = vpack.c.b16 %v1059, %v1055
    %v1384 = vpack.c.b16 %v1060, %v1056
    %v1385 = vpack.c.b16 %v1061, %v1057
    %v1386 = vpack.c.b16 %v1062, %v1058
    %v1387 = vpack.c.b16 %v1067, %v1063
    %v1388 = vpack.c.b16 %v1068, %v1064
    %v1389 = vpack.c.b16 %v1069, %v1065
    %v1390 = vpack.c.b16 %v1070, %v1066
    %v1391 = vpack.c.b16 %v1075, %v1071
    %v1392 = vpack.c.b16 %v1076, %v1072
    %v1393 = vpack.c.b16 %v1077, %v1073
    %v1394 = vpack.c.b16 %v1078, %v1074
    %v1395 = vpack.c.b16 %v1083, %v1079
    %v1396 = vpack.c.b16 %v1084, %v1080
    %v1397 = vpack.c.b16 %v1085, %v1081
    %v1398 = vpack.c.b16 %v1086, %v1082
    %v1399 = vpack.c.b16 %v1091, %v1087
    %v1400 = vpack.c.b16 %v1092, %v1088
    %v1401 = vpack.c.b16 %v1093, %v1089
    %v1402 = vpack.c.b16 %v1094, %v1090
    %v1403 = vpack.c.b16 %v1099, %v1095
    %v1404 = vpack.c.b16 %v1100, %v1096
    %v1405 = vpack.c.b16 %v1101, %v1097
    %v1406 = vpack.c.b16 %v1102, %v1098
    %v1407 = vpack.c.b16 %v1107, %v1103
    %v1408 = vpack.c.b16 %v1108, %v1104
    %v1409 = vpack.c.b16 %v1109, %v1105
    %v1410 = vpack.c.b16 %v1110, %v1106
    %v1411 = vpack.c.b16 %v1115, %v1111
    %v1412 = vpack.c.b16 %v1116, %v1112
    %v1413 = vpack.c.b16 %v1117, %v1113
    %v1414 = vpack.c.b16 %v1118, %v1114
    %v1415 = vpack.c.b16 %v1123, %v1119
    %v1416 = vpack.c.b16 %v1124, %v1120
    %v1417 = vpack.c.b16 %v1125, %v1121
    %v1418 = vpack.c.b16 %v1126, %v1122
    %v1419 = vpack.c.b16 %v1131, %v1127
    %v1420 = vpack.c.b16 %v1132, %v1128
    %v1421 = vpack.c.b16 %v1133, %v1129
    %v1422 = vpack.c.b16 %v1134, %v1130
    %v1423 = vpack.c.b16 %v1139, %v1135
    %v1424 = vpack.c.b16 %v1140, %v1136
    %v1425 = vpack.c.b16 %v1141, %v1137
    %v1426 = vpack.c.b16 %v1142, %v1138
    %v1427 = vpack.c.b16 %v1147, %v1143
    %v1428 = vpack.c.b16 %v1148, %v1144
    %v1429 = vpack.c.b16 %v1149, %v1145
    %v1430 = vpack.c.b16 %v1150, %v1146
    %v1431 = vpack.c.b16 %v1155, %v1151
    %v1432 = vpack.c.b16 %v1156, %v1152
    %v1433 = vpack.c.b16 %v1157, %v1153
    %v1434 = vpack.c.b16 %v1158, %v1154
    %v1435 = vpack.c.b16 %v1163, %v1159
    %v1436 = vpack.c.b16 %v1164, %v1160
    %v1437 = vpack.c.b16 %v1165, %v1161
    %v1438 = vpack.c.b16 %v1166, %v1162
    %v1439 = vpack.c.b16 %v1171, %v1167
    %v1440 = vpack.c.b16 %v1172, %v1168
    %v1441 = vpack.c.b16 %v1173, %v1169
    %v1442 = vpack.c.b16 %v1174, %v1170
    %v1443 = vpack.c.b16 %v1179, %v1175
    %v1444 = vpack.c.b16 %v1180, %v1176
    %v1445 = vpack.c.b16 %v1181, %v1177
    %v1446 = vpack.c.b16 %v1182, %v1178
    %v1447 = vpack.c.b16 %v1187, %v1183
    %v1448 = vpack.c.b16 %v1188, %v1184
    %v1449 = vpack.c.b16 %v1189, %v1185
    %v1450 = vpack.c.b16 %v1190, %v1186
    %v1451 = vpack.c.b16 %v1195, %v1191
    %v1452 = vpack.c.b16 %v1196, %v1192
    %v1453 = vpack.c.b16 %v1197, %v1193
    %v1454 = vpack.c.b16 %v1198, %v1194
    %v1455 = vpack.c.b16 %v1203, %v1199
    %v1456 = vpack.c.b16 %v1204, %v1200
    %v1457 = vpack.c.b16 %v1205, %v1201
    %v1458 = vpack.c.b16 %v1206, %v1202
    %v1459 = vpack.c.b16 %v1211, %v1207
    %v1460 = vpack.c.b16 %v1212, %v1208
    %v1461 = vpack.c.b16 %v1213, %v1209
    %v1462 = vpack.c.b16 %v1214, %v1210
    %v1463 = vpack.c.b16 %v1219, %v1215
    %v1464 = vpack.c.b16 %v1220, %v1216
    %v1465 = vpack.c.b16 %v1221, %v1217
    %v1466 = vpack.c.b16 %v1222, %v1218
    %v1467 = vpack.c.b16 %v1227, %v1223
    %v1468 = vpack.c.b16 %v1228, %v1224
    %v1469 = vpack.c.b16 %v1229, %v1225
    %v1470 = vpack.c.b16 %v1230, %v1226
    %v1471 = vpack.c.b16 %v1235, %v1231
    %v1472 = vpack.c.b16 %v1236, %v1232
    %v1473 = vpack.c.b16 %v1237, %v1233
    %v1474 = vpack.c.b16 %v1238, %v1234
    %v1475 = vpack.c.b16 %v1243, %v1239
    %v1476 = vpack.c.b16 %v1244, %v1240
    %v1477 = vpack.c.b16 %v1245, %v1241
    %v1478 = vpack.c.b16 %v1246, %v1242
    %v1479 = vpack.c.b16 %v1251, %v1247
    %v1480 = vpack.c.b16 %v1252, %v1248
    %v1481 = vpack.c.b16 %v1253, %v1249
    %v1482 = vpack.c.b16 %v1254, %v1250
    %v1483 = vpack.c.b16 %v1259, %v1255
    %v1484 = vpack.c.b16 %v1260, %v1256
    %v1485 = vpack.c.b16 %v1261, %v1257
    %v1486 = vpack.c.b16 %v1262, %v1258
    %v1487 = vpack.c.b16 %v1267, %v1263
    %v1488 = vpack.c.b16 %v1268, %v1264
    %v1489 = vpack.c.b16 %v1269, %v1265
    %v1490 = vpack.c.b16 %v1270, %v1266
    %v1491 = vpack.c.b16 %v1275, %v1271
    %v1492 = vpack.c.b16 %v1276, %v1272
    %v1493 = vpack.c.b16 %v1277, %v1273
    %v1494 = vpack.c.b16 %v1278, %v1274
    %v1495 = vpack.c.b16 %v1283, %v1279
    %v1496 = vpack.c.b16 %v1284, %v1280
    %v1497 = vpack.c.b16 %v1285, %v1281
    %v1498 = vpack.c.b16 %v1286, %v1282
    %v1499 = vpack.c.b16 %v1291, %v1287
    %v1500 = vpack.c.b16 %v1292, %v1288
    %v1501 = vpack.c.b16 %v1293, %v1289
    %v1502 = vpack.c.b16 %v1294, %v1290
    %v1503 = vpack.c.b16 %v1299, %v1295
    %v1504 = vpack.c.b16 %v1300, %v1296
    %v1505 = vpack.c.b16 %v1301, %v1297
    %v1506 = vpack.c.b16 %v1302, %v1298
    %v1507 = vpack.c.b16 %v1307, %v1303
    %v1508 = vpack.c.b16 %v1308, %v1304
    %v1509 = vpack.c.b16 %v1309, %v1305
    %v1510 = vpack.c.b16 %v1310, %v1306
    %v1511 = vpack.c.b16 %v1315, %v1311
    %v1512 = vpack.c.b16 %v1316, %v1312
    %v1513 = vpack.c.b16 %v1317, %v1313
    %v1514 = vpack.c.b16 %v1318, %v1314
    %v1515 = vpack.c.b16 %v1323, %v1319
    %v1516 = vpack.c.b16 %v1324, %v1320
    %v1517 = vpack.c.b16 %v1325, %v1321
    %v1518 = vpack.c.b16 %v1326, %v1322
    %1711 = vmatprep.subr.bf16.mxu0 %v1328
    %1712 = vmatpush1.bf16.msra.mxu0 %v1327
    %1713 = vmatprep.subr.bf16.mxu0 %v1332
    %1714 = vmatpush1.bf16.msra.mxu0 %v1331
    %1715 = vmatprep.subr.bf16.mxu0 %v1336
    %1716 = vmatpush1.bf16.msra.mxu0 %v1335
    %1717 = vmatprep.subr.bf16.mxu0 %v1340
    %1718 = vmatpush1.bf16.msra.mxu0 %v1339
    %1719 = vmatprep.subr.bf16.mxu0 %v1344
    %1720 = vmatpush1.bf16.msra.mxu0 %v1343
    %1721 = vmatprep.subr.bf16.mxu0 %v1348
    %1722 = vmatpush1.bf16.msra.mxu0 %v1347
    %1723 = vmatprep.subr.bf16.mxu0 %v1352
    %1724 = vmatpush1.bf16.msra.mxu0 %v1351
    %1725 = vmatprep.subr.bf16.mxu0 %v1356
    %1726 = vmatpush1.bf16.msra.mxu0 %v1355
    %1727 = vmatprep.subr.bf16.mxu0 %v1360
    %1728 = vmatpush1.bf16.msra.mxu0 %v1359
    %1729 = vmatprep.subr.bf16.mxu0 %v1364
    %1730 = vmatpush1.bf16.msra.mxu0 %v1363
    %1731 = vmatprep.subr.bf16.mxu0 %v1368
    %1732 = vmatpush1.bf16.msra.mxu0 %v1367
    %1733 = vmatprep.subr.bf16.mxu0 %v1372
    %1734 = vmatpush1.bf16.msra.mxu0 %v1371
    %1735 = vmatprep.subr.bf16.mxu0 %v1376
    %1736 = vmatpush1.bf16.msra.mxu0 %v1375
    %1737 = vmatprep.subr.bf16.mxu0 %v1380
    %1738 = vmatpush1.bf16.msra.mxu0 %v1379
    %1739 = vmatprep.subr.bf16.mxu0 %v1384
    %1740 = vmatpush1.bf16.msra.mxu0 %v1383
    %1741 = vmatprep.subr.bf16.mxu0 %v1388
    %1742 = vmatpush1.bf16.msra.mxu0 %v1387
    %1743 = vmatprep.mubr.bf16.mxu0 %v533
    %1744 = vmatmul.mubr.bf16.gmra.mrb[0].mxu0 %v532
    %v1745 = vpop.f32.mrb[0].mxu0
    %v1746 = vadd.f32 %v734, %v1745
    %v1747 = vpop.f32.mrb[0].mxu0
    %v1748 = vadd.f32 %v738, %v1747
    %v1749 = vpop.f32.mrb[0].mxu0
    %v1750 = vpop.f32.mrb[0].mxu0
    %1751 = vdwg.mxu0
    %1752 = vmatprep.subr.bf16.mxu0 %v1392
    %1753 = vmatpush1.bf16.msra.mxu0 %v1391
    %1754 = vmatprep.subr.bf16.mxu0 %v1396
    %1755 = vmatpush1.bf16.msra.mxu0 %v1395
    %1756 = vmatprep.subr.bf16.mxu0 %v1400
    %1757 = vmatpush1.bf16.msra.mxu0 %v1399
    %1758 = vmatprep.subr.bf16.mxu0 %v1404
    %1759 = vmatpush1.bf16.msra.mxu0 %v1403
    %1760 = vmatprep.subr.bf16.mxu0 %v1408
    %1761 = vmatpush1.bf16.msra.mxu0 %v1407
    %1762 = vmatprep.subr.bf16.mxu0 %v1412
    %1763 = vmatpush1.bf16.msra.mxu0 %v1411
    %1764 = vmatprep.subr.bf16.mxu0 %v1416
    %1765 = vmatpush1.bf16.msra.mxu0 %v1415
    %1766 = vmatprep.subr.bf16.mxu0 %v1420
    %1767 = vmatpush1.bf16.msra.mxu0 %v1419
    %1768 = vmatprep.subr.bf16.mxu0 %v1424
    %1769 = vmatpush1.bf16.msra.mxu0 %v1423
    %1770 = vmatprep.subr.bf16.mxu0 %v1428
    %1771 = vmatpush1.bf16.msra.mxu0 %v1427
    %1772 = vmatprep.subr.bf16.mxu0 %v1432
    %1773 = vmatpush1.bf16.msra.mxu0 %v1431
    %1774 = vmatprep.subr.bf16.mxu0 %v1436
    %1775 = vmatpush1.bf16.msra.mxu0 %v1435
    %1776 = vmatprep.subr.bf16.mxu0 %v1440
    %1777 = vmatpush1.bf16.msra.mxu0 %v1439
    %1778 = vmatprep.subr.bf16.mxu0 %v1444
    %1779 = vmatpush1.bf16.msra.mxu0 %v1443
    %1780 = vmatprep.subr.bf16.mxu0 %v1448
    %1781 = vmatpush1.bf16.msra.mxu0 %v1447
    %1782 = vmatprep.subr.bf16.mxu0 %v1452
    %1783 = vmatpush1.bf16.msra.mxu0 %v1451
    %1784 = vmatprep.mubr.bf16.mxu0 %v535
    %1785 = vmatmul.mubr.bf16.gmra.mrb[0].mxu0 %v534
    %v1786 = vpop.f32.mrb[0].mxu0
    %v1787 = vadd.f32 %v1746, %v1786
    %v1788 = vpop.f32.mrb[0].mxu0
    %v1789 = vadd.f32 %v1748, %v1788
    %v1790 = vpop.f32.mrb[0].mxu0
    %v1791 = vpop.f32.mrb[0].mxu0
    %1792 = vdwg.mxu0
    %1793 = vmatprep.subr.bf16.mxu0 %v1456
    %1794 = vmatpush1.bf16.msra.mxu0 %v1455
    %1795 = vmatprep.subr.bf16.mxu0 %v1460
    %1796 = vmatpush1.bf16.msra.mxu0 %v1459
    %1797 = vmatprep.subr.bf16.mxu0 %v1464
    %1798 = vmatpush1.bf16.msra.mxu0 %v1463
    %1799 = vmatprep.subr.bf16.mxu0 %v1468
    %1800 = vmatpush1.bf16.msra.mxu0 %v1467
    %1801 = vmatprep.subr.bf16.mxu0 %v1472
    %1802 = vmatpush1.bf16.msra.mxu0 %v1471
    %1803 = vmatprep.subr.bf16.mxu0 %v1476
    %1804 = vmatpush1.bf16.msra.mxu0 %v1475
    %1805 = vmatprep.subr.bf16.mxu0 %v1480
    %1806 = vmatpush1.bf16.msra.mxu0 %v1479
    %1807 = vmatprep.subr.bf16.mxu0 %v1484
    %1808 = vmatpush1.bf16.msra.mxu0 %v1483
    %1809 = vmatprep.subr.bf16.mxu0 %v1488
    %1810 = vmatpush1.bf16.msra.mxu0 %v1487
    %1811 = vmatprep.subr.bf16.mxu0 %v1492
    %1812 = vmatpush1.bf16.msra.mxu0 %v1491
    %1813 = vmatprep.subr.bf16.mxu0 %v1496
    %1814 = vmatpush1.bf16.msra.mxu0 %v1495
    %1815 = vmatprep.subr.bf16.mxu0 %v1500
    %1816 = vmatpush1.bf16.msra.mxu0 %v1499
    %1817 = vmatprep.subr.bf16.mxu0 %v1504
    %1818 = vmatpush1.bf16.msra.mxu0 %v1503
    %1819 = vmatprep.subr.bf16.mxu0 %v1508
    %1820 = vmatpush1.bf16.msra.mxu0 %v1507
    %1821 = vmatprep.subr.bf16.mxu0 %v1512
    %1822 = vmatpush1.bf16.msra.mxu0 %v1511
    %1823 = vmatprep.subr.bf16.mxu0 %v1516
    %1824 = vmatpush1.bf16.msra.mxu0 %v1515
    %1825 = vmatprep.mubr.bf16.mxu0 %v537
    %1826 = vmatmul.mubr.bf16.gmra.mrb[0].mxu0 %v536
    %v1827 = vpop.f32.mrb[0].mxu0
    %v1828 = vadd.f32 %v1787, %v1827
    %v1829 = vpop.f32.mrb[0].mxu0
    %v1830 = vadd.f32 %v1789, %v1829
    %v1831 = vpop.f32.mrb[0].mxu0
    %v1832 = vpop.f32.mrb[0].mxu0
    %1833 = vdwg.mxu0
    %1834 = vmatprep.subr.bf16.mxu0 %v1330
    %1835 = vmatpush1.bf16.msra.mxu0 %v1329
    %1836 = vmatprep.subr.bf16.mxu0 %v1334
    %1837 = vmatpush1.bf16.msra.mxu0 %v1333
    %1838 = vmatprep.subr.bf16.mxu0 %v1338
    %1839 = vmatpush1.bf16.msra.mxu0 %v1337
    %1840 = vmatprep.subr.bf16.mxu0 %v1342
    %1841 = vmatpush1.bf16.msra.mxu0 %v1341
    %1842 = vmatprep.subr.bf16.mxu0 %v1346
    %1843 = vmatpush1.bf16.msra.mxu0 %v1345
    %1844 = vmatprep.subr.bf16.mxu0 %v1350
    %1845 = vmatpush1.bf16.msra.mxu0 %v1349
    %1846 = vmatprep.subr.bf16.mxu0 %v1354
    %1847 = vmatpush1.bf16.msra.mxu0 %v1353
    %1848 = vmatprep.subr.bf16.mxu0 %v1358
    %1849 = vmatpush1.bf16.msra.mxu0 %v1357
    %1850 = vmatprep.subr.bf16.mxu0 %v1362
    %1851 = vmatpush1.bf16.msra.mxu0 %v1361
    %1852 = vmatprep.subr.bf16.mxu0 %v1366
    %1853 = vmatpush1.bf16.msra.mxu0 %v1365
    %1854 = vmatprep.subr.bf16.mxu0 %v1370
    %1855 = vmatpush1.bf16.msra.mxu0 %v1369
    %1856 = vmatprep.subr.bf16.mxu0 %v1374
    %1857 = vmatpush1.bf16.msra.mxu0 %v1373
    %1858 = vmatprep.subr.bf16.mxu0 %v1378
    %1859 = vmatpush1.bf16.msra.mxu0 %v1377
    %1860 = vmatprep.subr.bf16.mxu0 %v1382
    %1861 = vmatpush1.bf16.msra.mxu0 %v1381
    %1862 = vmatprep.subr.bf16.mxu0 %v1386
    %1863 = vmatpush1.bf16.msra.mxu0 %v1385
    %1864 = vmatprep.subr.bf16.mxu0 %v1390
    %1865 = vmatpush1.bf16.msra.mxu0 %v1389
    %1866 = vmatprep.mubr.bf16.mxu0 %v533
    %1867 = vmatmul.mubr.bf16.gmra.mrb[0].mxu0 %v532
    %v1868 = vpop.f32.mrb[0].mxu0
    %v1869 = vadd.f32 %v742, %v1868
    %v1870 = vpop.f32.mrb[0].mxu0
    %v1871 = vadd.f32 %v746, %v1870
    %v1872 = vpop.f32.mrb[0].mxu0
    %v1873 = vpop.f32.mrb[0].mxu0
    %1874 = vdwg.mxu0
    %1875 = vmatprep.subr.bf16.mxu0 %v1394
    %1876 = vmatpush1.bf16.msra.mxu0 %v1393
    %1877 = vmatprep.subr.bf16.mxu0 %v1398
    %1878 = vmatpush1.bf16.msra.mxu0 %v1397
    %1879 = vmatprep.subr.bf16.mxu0 %v1402
    %1880 = vmatpush1.bf16.msra.mxu0 %v1401
    %1881 = vmatprep.subr.bf16.mxu0 %v1406
    %1882 = vmatpush1.bf16.msra.mxu0 %v1405
    %1883 = vmatprep.subr.bf16.mxu0 %v1410
    %1884 = vmatpush1.bf16.msra.mxu0 %v1409
    %1885 = vmatprep.subr.bf16.mxu0 %v1414
    %1886 = vmatpush1.bf16.msra.mxu0 %v1413
    %1887 = vmatprep.subr.bf16.mxu0 %v1418
    %1888 = vmatpush1.bf16.msra.mxu0 %v1417
    %1889 = vmatprep.subr.bf16.mxu0 %v1422
    %1890 = vmatpush1.bf16.msra.mxu0 %v1421
    %1891 = vmatprep.subr.bf16.mxu0 %v1426
    %1892 = vmatpush1.bf16.msra.mxu0 %v1425
    %1893 = vmatprep.subr.bf16.mxu0 %v1430
    %1894 = vmatpush1.bf16.msra.mxu0 %v1429
    %1895 = vmatprep.subr.bf16.mxu0 %v1434
    %1896 = vmatpush1.bf16.msra.mxu0 %v1433
    %1897 = vmatprep.subr.bf16.mxu0 %v1438
    %1898 = vmatpush1.bf16.msra.mxu0 %v1437
    %1899 = vmatprep.subr.bf16.mxu0 %v1442
    %1900 = vmatpush1.bf16.msra.mxu0 %v1441
    %1901 = vmatprep.subr.bf16.mxu0 %v1446
    %1902 = vmatpush1.bf16.msra.mxu0 %v1445
    %1903 = vmatprep.subr.bf16.mxu0 %v1450
    %1904 = vmatpush1.bf16.msra.mxu0 %v1449
    %1905 = vmatprep.subr.bf16.mxu0 %v1454
    %1906 = vmatpush1.bf16.msra.mxu0 %v1453
    %1907 = vmatprep.mubr.bf16.mxu0 %v535
    %1908 = vmatmul.mubr.bf16.gmra.mrb[0].mxu0 %v534
    %v1909 = vpop.f32.mrb[0].mxu0
    %v1910 = vadd.f32 %v1869, %v1909
    %v1911 = vpop.f32.mrb[0].mxu0
    %v1912 = vadd.f32 %v1871, %v1911
    %v1913 = vpop.f32.mrb[0].mxu0
    %v1914 = vpop.f32.mrb[0].mxu0
    %1915 = vdwg.mxu0
    %1916 = vmatprep.subr.bf16.mxu0 %v1458
    %1917 = vmatpush1.bf16.msra.mxu0 %v1457
    %1918 = vmatprep.subr.bf16.mxu0 %v1462
    %1919 = vmatpush1.bf16.msra.mxu0 %v1461
    %1920 = vmatprep.subr.bf16.mxu0 %v1466
    %1921 = vmatpush1.bf16.msra.mxu0 %v1465
    %1922 = vmatprep.subr.bf16.mxu0 %v1470
    %1923 = vmatpush1.bf16.msra.mxu0 %v1469
    %1924 = vmatprep.subr.bf16.mxu0 %v1474
    %1925 = vmatpush1.bf16.msra.mxu0 %v1473
    %1926 = vmatprep.subr.bf16.mxu0 %v1478
    %1927 = vmatpush1.bf16.msra.mxu0 %v1477
    %1928 = vmatprep.subr.bf16.mxu0 %v1482
    %1929 = vmatpush1.bf16.msra.mxu0 %v1481
    %1930 = vmatprep.subr.bf16.mxu0 %v1486
    %1931 = vmatpush1.bf16.msra.mxu0 %v1485
    %1932 = vmatprep.subr.bf16.mxu0 %v1490
    %1933 = vmatpush1.bf16.msra.mxu0 %v1489
    %1934 = vmatprep.subr.bf16.mxu0 %v1494
    %1935 = vmatpush1.bf16.msra.mxu0 %v1493
    %1936 = vmatprep.subr.bf16.mxu0 %v1498
    %1937 = vmatpush1.bf16.msra.mxu0 %v1497
    %1938 = vmatprep.subr.bf16.mxu0 %v1502
    %1939 = vmatpush1.bf16.msra.mxu0 %v1501
    %1940 = vmatprep.subr.bf16.mxu0 %v1506
    %1941 = vmatpush1.bf16.msra.mxu0 %v1505
    %1942 = vmatprep.subr.bf16.mxu0 %v1510
    %1943 = vmatpush1.bf16.msra.mxu0 %v1509
    %1944 = vmatprep.subr.bf16.mxu0 %v1514
    %1945 = vmatpush1.bf16.msra.mxu0 %v1513
    %1946 = vmatprep.subr.bf16.mxu0 %v1518
    %1947 = vmatpush1.bf16.msra.mxu0 %v1517
    %1948 = vmatprep.mubr.bf16.mxu0 %v537
    %1949 = vmatmul.mubr.bf16.gmra.mrb[0].mxu0 %v536
    %v1950 = vpop.f32.mrb[0].mxu0
    %v1951 = vadd.f32 %v1910, %v1950
    %v1952 = vpop.f32.mrb[0].mxu0
    %v1953 = vadd.f32 %v1912, %v1952
    %v1954 = vpop.f32.mrb[0].mxu0
    %v1955 = vpop.f32.mrb[0].mxu0
    %1956 = vdwg.mxu0
    %v1957 = vmax.f32 %v1828, 0.0
    %v1958 = vmax.f32 %v1830, 0.0
    %v1959 = vmax.f32 %v1951, 0.0
    %v1960 = vmax.f32 %v1953, 0.0
    %v1961 = vpack.c.bf16 %v1957, %v1957
    %v1962 = vpack.c.bf16 %v1958, %v1958
    %v1963 = vpack.c.bf16 %v1959, %v1959
    %v1964 = vpack.c.bf16 %v1960, %v1960
    %v1965 = vld [vmem:[#allocation9] sm:$0xff]
    %v1966 = vld [vmem:[#allocation9 + $0x8] sm:$0xff]
    %v1967 = vld [vmem:[#allocation9 + $0x10] sm:$0xff]
    %v1968 = vld [vmem:[#allocation9 + $0x18] sm:$0xff]
    %v1969 = vld [vmem:[#allocation9 + $0x20] sm:$0xff]
    %v1970 = vld [vmem:[#allocation9 + $0x28] sm:$0xff]
    %v1971 = vld [vmem:[#allocation9 + $0x30] sm:$0xff]
    %v1972 = vld [vmem:[#allocation9 + $0x38] sm:$0xff]
    %v1973 = vld [vmem:[#allocation9 + $0x40] sm:$0xff]
    %v1974 = vld [vmem:[#allocation9 + $0x48] sm:$0xff]
    %v1975 = vld [vmem:[#allocation9 + $0x50] sm:$0xff]
    %v1976 = vld [vmem:[#allocation9 + $0x58] sm:$0xff]
    %v1977 = vld [vmem:[#allocation9 + $0x60] sm:$0xff]
    %v1978 = vld [vmem:[#allocation9 + $0x68] sm:$0xff]
    %v1979 = vld [vmem:[#allocation9 + $0x70] sm:$0xff]
    %v1980 = vld [vmem:[#allocation9 + $0x78] sm:$0xff]
    %v1981 = vld [vmem:[#allocation9 + $0x80] sm:$0xff]
    %v1982 = vld [vmem:[#allocation9 + $0x88] sm:$0xff]
    %v1983 = vld [vmem:[#allocation9 + $0x90] sm:$0xff]
    %v1984 = vld [vmem:[#allocation9 + $0x98] sm:$0xff]
    %v1985 = vld [vmem:[#allocation9 + $0xa0] sm:$0xff]
    %v1986 = vld [vmem:[#allocation9 + $0xa8] sm:$0xff]
    %v1987 = vld [vmem:[#allocation9 + $0xb0] sm:$0xff]
    %v1988 = vld [vmem:[#allocation9 + $0xb8] sm:$0xff]
    %v1989 = vld [vmem:[#allocation9 + $0xc0] sm:$0xff]
    %v1990 = vld [vmem:[#allocation9 + $0xc8] sm:$0xff]
    %v1991 = vld [vmem:[#allocation9 + $0xd0] sm:$0xff]
    %v1992 = vld [vmem:[#allocation9 + $0xd8] sm:$0xff]
    %v1993 = vld [vmem:[#allocation9 + $0xe0] sm:$0xff]
    %v1994 = vld [vmem:[#allocation9 + $0xe8] sm:$0xff]
    %v1995 = vld [vmem:[#allocation9 + $0xf0] sm:$0xff]
    %v1996 = vld [vmem:[#allocation9 + $0xf8] sm:$0xff]
    %v1997 = vld [vmem:[#allocation9 + $0x100] sm:$0xff]
    %v1998 = vld [vmem:[#allocation9 + $0x108] sm:$0xff]
    %v1999 = vld [vmem:[#allocation9 + $0x110] sm:$0xff]
    %v2000 = vld [vmem:[#allocation9 + $0x118] sm:$0xff]
    %v2001 = vld [vmem:[#allocation9 + $0x120] sm:$0xff]
    %v2002 = vld [vmem:[#allocation9 + $0x128] sm:$0xff]
    %v2003 = vld [vmem:[#allocation9 + $0x130] sm:$0xff]
    %v2004 = vld [vmem:[#allocation9 + $0x138] sm:$0xff]
    %v2005 = vld [vmem:[#allocation9 + $0x140] sm:$0xff]
    %v2006 = vld [vmem:[#allocation9 + $0x148] sm:$0xff]
    %v2007 = vld [vmem:[#allocation9 + $0x150] sm:$0xff]
    %v2008 = vld [vmem:[#allocation9 + $0x158] sm:$0xff]
    %v2009 = vld [vmem:[#allocation9 + $0x160] sm:$0xff]
    %v2010 = vld [vmem:[#allocation9 + $0x168] sm:$0xff]
    %v2011 = vld [vmem:[#allocation9 + $0x170] sm:$0xff]
    %v2012 = vld [vmem:[#allocation9 + $0x178] sm:$0xff]
    %v2013 = vld [vmem:[#allocation9 + $0x180] sm:$0xff]
    %v2014 = vld [vmem:[#allocation9 + $0x188] sm:$0xff]
    %v2015 = vld [vmem:[#allocation9 + $0x190] sm:$0xff]
    %v2016 = vld [vmem:[#allocation9 + $0x198] sm:$0xff]
    %v2017 = vld [vmem:[#allocation9 + $0x1a0] sm:$0xff]
    %v2018 = vld [vmem:[#allocation9 + $0x1a8] sm:$0xff]
    %v2019 = vld [vmem:[#allocation9 + $0x1b0] sm:$0xff]
    %v2020 = vld [vmem:[#allocation9 + $0x1b8] sm:$0xff]
    %v2021 = vld [vmem:[#allocation9 + $0x1c0] sm:$0xff]
    %v2022 = vld [vmem:[#allocation9 + $0x1c8] sm:$0xff]
    %v2023 = vld [vmem:[#allocation9 + $0x1d0] sm:$0xff]
    %v2024 = vld [vmem:[#allocation9 + $0x1d8] sm:$0xff]
    %v2025 = vld [vmem:[#allocation9 + $0x1e0] sm:$0xff]
    %v2026 = vld [vmem:[#allocation9 + $0x1e8] sm:$0xff]
    %v2027 = vld [vmem:[#allocation9 + $0x1f0] sm:$0xff]
    %v2028 = vld [vmem:[#allocation9 + $0x1f8] sm:$0xff]
    %v2029 = vld [vmem:[#allocation9 + $0x200] sm:$0xff]
    %v2030 = vld [vmem:[#allocation9 + $0x208] sm:$0xff]
    %v2031 = vld [vmem:[#allocation9 + $0x210] sm:$0xff]
    %v2032 = vld [vmem:[#allocation9 + $0x218] sm:$0xff]
    %v2033 = vld [vmem:[#allocation9 + $0x220] sm:$0xff]
    %v2034 = vld [vmem:[#allocation9 + $0x228] sm:$0xff]
    %v2035 = vld [vmem:[#allocation9 + $0x230] sm:$0xff]
    %v2036 = vld [vmem:[#allocation9 + $0x238] sm:$0xff]
    %v2037 = vld [vmem:[#allocation9 + $0x240] sm:$0xff]
    %v2038 = vld [vmem:[#allocation9 + $0x248] sm:$0xff]
    %v2039 = vld [vmem:[#allocation9 + $0x250] sm:$0xff]
    %v2040 = vld [vmem:[#allocation9 + $0x258] sm:$0xff]
    %v2041 = vld [vmem:[#allocation9 + $0x260] sm:$0xff]
    %v2042 = vld [vmem:[#allocation9 + $0x268] sm:$0xff]
    %v2043 = vld [vmem:[#allocation9 + $0x270] sm:$0xff]
    %v2044 = vld [vmem:[#allocation9 + $0x278] sm:$0xff]
    %v2045 = vld [vmem:[#allocation9 + $0x280] sm:$0xff]
    %v2046 = vld [vmem:[#allocation9 + $0x288] sm:$0xff]
    %v2047 = vld [vmem:[#allocation9 + $0x290] sm:$0xff]
    %v2048 = vld [vmem:[#allocation9 + $0x298] sm:$0xff]
    %v2049 = vld [vmem:[#allocation9 + $0x2a0] sm:$0xff]
    %v2050 = vld [vmem:[#allocation9 + $0x2a8] sm:$0xff]
    %v2051 = vld [vmem:[#allocation9 + $0x2b0] sm:$0xff]
    %v2052 = vld [vmem:[#allocation9 + $0x2b8] sm:$0xff]
    %v2053 = vld [vmem:[#allocation9 + $0x2c0] sm:$0xff]
    %v2054 = vld [vmem:[#allocation9 + $0x2c8] sm:$0xff]
    %v2055 = vld [vmem:[#allocation9 + $0x2d0] sm:$0xff]
    %v2056 = vld [vmem:[#allocation9 + $0x2d8] sm:$0xff]
    %v2057 = vld [vmem:[#allocation9 + $0x2e0] sm:$0xff]
    %v2058 = vld [vmem:[#allocation9 + $0x2e8] sm:$0xff]
    %v2059 = vld [vmem:[#allocation9 + $0x2f0] sm:$0xff]
    %v2060 = vld [vmem:[#allocation9 + $0x2f8] sm:$0xff]
    %v2061 = vld [vmem:[#allocation9 + $0x300] sm:$0xff]
    %v2062 = vld [vmem:[#allocation9 + $0x308] sm:$0xff]
    %v2063 = vld [vmem:[#allocation9 + $0x310] sm:$0xff]
    %v2064 = vld [vmem:[#allocation9 + $0x318] sm:$0xff]
    %v2065 = vld [vmem:[#allocation9 + $0x320] sm:$0xff]
    %v2066 = vld [vmem:[#allocation9 + $0x328] sm:$0xff]
    %v2067 = vld [vmem:[#allocation9 + $0x330] sm:$0xff]
    %v2068 = vld [vmem:[#allocation9 + $0x338] sm:$0xff]
    %v2069 = vld [vmem:[#allocation9 + $0x340] sm:$0xff]
    %v2070 = vld [vmem:[#allocation9 + $0x348] sm:$0xff]
    %v2071 = vld [vmem:[#allocation9 + $0x350] sm:$0xff]
    %v2072 = vld [vmem:[#allocation9 + $0x358] sm:$0xff]
    %v2073 = vld [vmem:[#allocation9 + $0x360] sm:$0xff]
    %v2074 = vld [vmem:[#allocation9 + $0x368] sm:$0xff]
    %v2075 = vld [vmem:[#allocation9 + $0x370] sm:$0xff]
    %v2076 = vld [vmem:[#allocation9 + $0x378] sm:$0xff]
    %v2077 = vld [vmem:[#allocation9 + $0x380] sm:$0xff]
    %v2078 = vld [vmem:[#allocation9 + $0x388] sm:$0xff]
    %v2079 = vld [vmem:[#allocation9 + $0x390] sm:$0xff]
    %v2080 = vld [vmem:[#allocation9 + $0x398] sm:$0xff]
    %v2081 = vld [vmem:[#allocation9 + $0x3a0] sm:$0xff]
    %v2082 = vld [vmem:[#allocation9 + $0x3a8] sm:$0xff]
    %v2083 = vld [vmem:[#allocation9 + $0x3b0] sm:$0xff]
    %v2084 = vld [vmem:[#allocation9 + $0x3b8] sm:$0xff]
    %v2085 = vld [vmem:[#allocation9 + $0x3c0] sm:$0xff]
    %v2086 = vld [vmem:[#allocation9 + $0x3c8] sm:$0xff]
    %v2087 = vld [vmem:[#allocation9 + $0x3d0] sm:$0xff]
    %v2088 = vld [vmem:[#allocation9 + $0x3d8] sm:$0xff]
    %v2089 = vld [vmem:[#allocation9 + $0x3e0] sm:$0xff]
    %v2090 = vld [vmem:[#allocation9 + $0x3e8] sm:$0xff]
    %v2091 = vld [vmem:[#allocation9 + $0x3f0] sm:$0xff]
    %v2092 = vld [vmem:[#allocation9 + $0x3f8] sm:$0xff]
    %v2093 = vld [vmem:[#allocation9 + $0x400] sm:$0xff]
    %v2094 = vld [vmem:[#allocation9 + $0x408] sm:$0xff]
    %v2095 = vld [vmem:[#allocation9 + $0x410] sm:$0xff]
    %v2096 = vld [vmem:[#allocation9 + $0x418] sm:$0xff]
    %v2097 = vld [vmem:[#allocation9 + $0x420] sm:$0xff]
    %v2098 = vld [vmem:[#allocation9 + $0x428] sm:$0xff]
    %v2099 = vld [vmem:[#allocation9 + $0x430] sm:$0xff]
    %v2100 = vld [vmem:[#allocation9 + $0x438] sm:$0xff]
    %v2101 = vld [vmem:[#allocation9 + $0x440] sm:$0xff]
    %v2102 = vld [vmem:[#allocation9 + $0x448] sm:$0xff]
    %v2103 = vld [vmem:[#allocation9 + $0x450] sm:$0xff]
    %v2104 = vld [vmem:[#allocation9 + $0x458] sm:$0xff]
    %v2105 = vld [vmem:[#allocation9 + $0x460] sm:$0xff]
    %v2106 = vld [vmem:[#allocation9 + $0x468] sm:$0xff]
    %v2107 = vld [vmem:[#allocation9 + $0x470] sm:$0xff]
    %v2108 = vld [vmem:[#allocation9 + $0x478] sm:$0xff]
    %v2109 = vld [vmem:[#allocation9 + $0x480] sm:$0xff]
    %v2110 = vld [vmem:[#allocation9 + $0x488] sm:$0xff]
    %v2111 = vld [vmem:[#allocation9 + $0x490] sm:$0xff]
    %v2112 = vld [vmem:[#allocation9 + $0x498] sm:$0xff]
    %v2113 = vld [vmem:[#allocation9 + $0x4a0] sm:$0xff]
    %v2114 = vld [vmem:[#allocation9 + $0x4a8] sm:$0xff]
    %v2115 = vld [vmem:[#allocation9 + $0x4b0] sm:$0xff]
    %v2116 = vld [vmem:[#allocation9 + $0x4b8] sm:$0xff]
    %v2117 = vld [vmem:[#allocation9 + $0x4c0] sm:$0xff]
    %v2118 = vld [vmem:[#allocation9 + $0x4c8] sm:$0xff]
    %v2119 = vld [vmem:[#allocation9 + $0x4d0] sm:$0xff]
    %v2120 = vld [vmem:[#allocation9 + $0x4d8] sm:$0xff]
    %v2121 = vld [vmem:[#allocation9 + $0x4e0] sm:$0xff]
    %v2122 = vld [vmem:[#allocation9 + $0x4e8] sm:$0xff]
    %v2123 = vld [vmem:[#allocation9 + $0x4f0] sm:$0xff]
    %v2124 = vld [vmem:[#allocation9 + $0x4f8] sm:$0xff]
    %v2125 = vld [vmem:[#allocation9 + $0x500] sm:$0xff]
    %v2126 = vld [vmem:[#allocation9 + $0x508] sm:$0xff]
    %v2127 = vld [vmem:[#allocation9 + $0x510] sm:$0xff]
    %v2128 = vld [vmem:[#allocation9 + $0x518] sm:$0xff]
    %v2129 = vld [vmem:[#allocation9 + $0x520] sm:$0xff]
    %v2130 = vld [vmem:[#allocation9 + $0x528] sm:$0xff]
    %v2131 = vld [vmem:[#allocation9 + $0x530] sm:$0xff]
    %v2132 = vld [vmem:[#allocation9 + $0x538] sm:$0xff]
    %v2133 = vld [vmem:[#allocation9 + $0x540] sm:$0xff]
    %v2134 = vld [vmem:[#allocation9 + $0x548] sm:$0xff]
    %v2135 = vld [vmem:[#allocation9 + $0x550] sm:$0xff]
    %v2136 = vld [vmem:[#allocation9 + $0x558] sm:$0xff]
    %v2137 = vld [vmem:[#allocation9 + $0x560] sm:$0xff]
    %v2138 = vld [vmem:[#allocation9 + $0x568] sm:$0xff]
    %v2139 = vld [vmem:[#allocation9 + $0x570] sm:$0xff]
    %v2140 = vld [vmem:[#allocation9 + $0x578] sm:$0xff]
    %v2141 = vld [vmem:[#allocation9 + $0x580] sm:$0xff]
    %v2142 = vld [vmem:[#allocation9 + $0x588] sm:$0xff]
    %v2143 = vld [vmem:[#allocation9 + $0x590] sm:$0xff]
    %v2144 = vld [vmem:[#allocation9 + $0x598] sm:$0xff]
    %v2145 = vld [vmem:[#allocation9 + $0x5a0] sm:$0xff]
    %v2146 = vld [vmem:[#allocation9 + $0x5a8] sm:$0xff]
    %v2147 = vld [vmem:[#allocation9 + $0x5b0] sm:$0xff]
    %v2148 = vld [vmem:[#allocation9 + $0x5b8] sm:$0xff]
    %v2149 = vld [vmem:[#allocation9 + $0x5c0] sm:$0xff]
    %v2150 = vld [vmem:[#allocation9 + $0x5c8] sm:$0xff]
    %v2151 = vld [vmem:[#allocation9 + $0x5d0] sm:$0xff]
    %v2152 = vld [vmem:[#allocation9 + $0x5d8] sm:$0xff]
    %v2153 = vld [vmem:[#allocation9 + $0x5e0] sm:$0xff]
    %v2154 = vld [vmem:[#allocation9 + $0x5e8] sm:$0xff]
    %v2155 = vld [vmem:[#allocation9 + $0x5f0] sm:$0xff]
    %v2156 = vld [vmem:[#allocation9 + $0x5f8] sm:$0xff]
    %v2157 = vld [vmem:[%s5] sm:$0x3f]
    %v2159 = vlaneseq
    %v2160 = vshrl.u32 %v2159, 7
    %v2161 = vsub.s32 0, %v2160
    %v2162 = vrot.slane %v2157, %v2161
    %v2163 = vlaneseq
    %v2164 = vshrl.u32 %v2163, 7
    %v2165 = vsub.s32 1, %v2164
    %v2166 = vrot.slane %v2157, %v2165
    %v2167 = vlaneseq
    %v2168 = vshrl.u32 %v2167, 7
    %v2169 = vsub.s32 2, %v2168
    %v2170 = vrot.slane %v2157, %v2169
    %v2171 = vlaneseq
    %v2172 = vshrl.u32 %v2171, 7
    %v2173 = vsub.s32 3, %v2172
    %v2174 = vrot.slane %v2157, %v2173
    %v2175 = vlaneseq
    %v2176 = vshrl.u32 %v2175, 7
    %v2177 = vsub.s32 4, %v2176
    %v2178 = vrot.slane %v2157, %v2177
    %v2179 = vlaneseq
    %v2180 = vshrl.u32 %v2179, 7
    %v2181 = vsub.s32 5, %v2180
    %v2182 = vrot.slane %v2157, %v2181
    %v2381 = vunpack.c.l.b16 %v1965
    %v2382 = vunpack.c.h.b16 %v1965
    %v2383 = vunpack.c.l.b16 %v1966
    %v2384 = vunpack.c.h.b16 %v1966
    %v2385 = vunpack.c.l.b16 %v1967
    %v2386 = vunpack.c.h.b16 %v1967
    %v2387 = vunpack.c.l.b16 %v1968
    %v2388 = vunpack.c.h.b16 %v1968
    %v2389 = vunpack.c.l.b16 %v1969
    %v2390 = vunpack.c.h.b16 %v1969
    %v2391 = vunpack.c.l.b16 %v1970
    %v2392 = vunpack.c.h.b16 %v1970
    %v2393 = vunpack.c.l.b16 %v1971
    %v2394 = vunpack.c.h.b16 %v1971
    %v2395 = vunpack.c.l.b16 %v1972
    %v2396 = vunpack.c.h.b16 %v1972
    %v2397 = vunpack.c.l.b16 %v1973
    %v2398 = vunpack.c.h.b16 %v1973
    %v2399 = vunpack.c.l.b16 %v1974
    %v2400 = vunpack.c.h.b16 %v1974
    %v2401 = vunpack.c.l.b16 %v1975
    %v2402 = vunpack.c.h.b16 %v1975
    %v2403 = vunpack.c.l.b16 %v1976
    %v2404 = vunpack.c.h.b16 %v1976
    %v2405 = vunpack.c.l.b16 %v1977
    %v2406 = vunpack.c.h.b16 %v1977
    %v2407 = vunpack.c.l.b16 %v1978
    %v2408 = vunpack.c.h.b16 %v1978
    %v2409 = vunpack.c.l.b16 %v1979
    %v2410 = vunpack.c.h.b16 %v1979
    %v2411 = vunpack.c.l.b16 %v1980
    %v2412 = vunpack.c.h.b16 %v1980
    %v2413 = vunpack.c.l.b16 %v1981
    %v2414 = vunpack.c.h.b16 %v1981
    %v2415 = vunpack.c.l.b16 %v1982
    %v2416 = vunpack.c.h.b16 %v1982
    %v2417 = vunpack.c.l.b16 %v1983
    %v2418 = vunpack.c.h.b16 %v1983
    %v2419 = vunpack.c.l.b16 %v1984
    %v2420 = vunpack.c.h.b16 %v1984
    %v2421 = vunpack.c.l.b16 %v1985
    %v2422 = vunpack.c.h.b16 %v1985
    %v2423 = vunpack.c.l.b16 %v1986
    %v2424 = vunpack.c.h.b16 %v1986
    %v2425 = vunpack.c.l.b16 %v1987
    %v2426 = vunpack.c.h.b16 %v1987
    %v2427 = vunpack.c.l.b16 %v1988
    %v2428 = vunpack.c.h.b16 %v1988
    %v2429 = vunpack.c.l.b16 %v1989
    %v2430 = vunpack.c.h.b16 %v1989
    %v2431 = vunpack.c.l.b16 %v1990
    %v2432 = vunpack.c.h.b16 %v1990
    %v2433 = vunpack.c.l.b16 %v1991
    %v2434 = vunpack.c.h.b16 %v1991
    %v2435 = vunpack.c.l.b16 %v1992
    %v2436 = vunpack.c.h.b16 %v1992
    %v2437 = vunpack.c.l.b16 %v1993
    %v2438 = vunpack.c.h.b16 %v1993
    %v2439 = vunpack.c.l.b16 %v1994
    %v2440 = vunpack.c.h.b16 %v1994
    %v2441 = vunpack.c.l.b16 %v1995
    %v2442 = vunpack.c.h.b16 %v1995
    %v2443 = vunpack.c.l.b16 %v1996
    %v2444 = vunpack.c.h.b16 %v1996
    %v2445 = vunpack.c.l.b16 %v1997
    %v2446 = vunpack.c.h.b16 %v1997
    %v2447 = vunpack.c.l.b16 %v1998
    %v2448 = vunpack.c.h.b16 %v1998
    %v2449 = vunpack.c.l.b16 %v1999
    %v2450 = vunpack.c.h.b16 %v1999
    %v2451 = vunpack.c.l.b16 %v2000
    %v2452 = vunpack.c.h.b16 %v2000
    %v2453 = vunpack.c.l.b16 %v2001
    %v2454 = vunpack.c.h.b16 %v2001
    %v2455 = vunpack.c.l.b16 %v2002
    %v2456 = vunpack.c.h.b16 %v2002
    %v2457 = vunpack.c.l.b16 %v2003
    %v2458 = vunpack.c.h.b16 %v2003
    %v2459 = vunpack.c.l.b16 %v2004
    %v2460 = vunpack.c.h.b16 %v2004
    %v2461 = vunpack.c.l.b16 %v2005
    %v2462 = vunpack.c.h.b16 %v2005
    %v2463 = vunpack.c.l.b16 %v2006
    %v2464 = vunpack.c.h.b16 %v2006
    %v2465 = vunpack.c.l.b16 %v2007
    %v2466 = vunpack.c.h.b16 %v2007
    %v2467 = vunpack.c.l.b16 %v2008
    %v2468 = vunpack.c.h.b16 %v2008
    %v2469 = vunpack.c.l.b16 %v2009
    %v2470 = vunpack.c.h.b16 %v2009
    %v2471 = vunpack.c.l.b16 %v2010
    %v2472 = vunpack.c.h.b16 %v2010
    %v2473 = vunpack.c.l.b16 %v2011
    %v2474 = vunpack.c.h.b16 %v2011
    %v2475 = vunpack.c.l.b16 %v2012
    %v2476 = vunpack.c.h.b16 %v2012
    %v2477 = vunpack.c.l.b16 %v2013
    %v2478 = vunpack.c.h.b16 %v2013
    %v2479 = vunpack.c.l.b16 %v2014
    %v2480 = vunpack.c.h.b16 %v2014
    %v2481 = vunpack.c.l.b16 %v2015
    %v2482 = vunpack.c.h.b16 %v2015
    %v2483 = vunpack.c.l.b16 %v2016
    %v2484 = vunpack.c.h.b16 %v2016
    %v2485 = vunpack.c.l.b16 %v2017
    %v2486 = vunpack.c.h.b16 %v2017
    %v2487 = vunpack.c.l.b16 %v2018
    %v2488 = vunpack.c.h.b16 %v2018
    %v2489 = vunpack.c.l.b16 %v2019
    %v2490 = vunpack.c.h.b16 %v2019
    %v2491 = vunpack.c.l.b16 %v2020
    %v2492 = vunpack.c.h.b16 %v2020
    %v2493 = vunpack.c.l.b16 %v2021
    %v2494 = vunpack.c.h.b16 %v2021
    %v2495 = vunpack.c.l.b16 %v2022
    %v2496 = vunpack.c.h.b16 %v2022
    %v2497 = vunpack.c.l.b16 %v2023
    %v2498 = vunpack.c.h.b16 %v2023
    %v2499 = vunpack.c.l.b16 %v2024
    %v2500 = vunpack.c.h.b16 %v2024
    %v2501 = vunpack.c.l.b16 %v2025
    %v2502 = vunpack.c.h.b16 %v2025
    %v2503 = vunpack.c.l.b16 %v2026
    %v2504 = vunpack.c.h.b16 %v2026
    %v2505 = vunpack.c.l.b16 %v2027
    %v2506 = vunpack.c.h.b16 %v2027
    %v2507 = vunpack.c.l.b16 %v2028
    %v2508 = vunpack.c.h.b16 %v2028
    %v2509 = vunpack.c.l.b16 %v2029
    %v2510 = vunpack.c.h.b16 %v2029
    %v2511 = vunpack.c.l.b16 %v2030
    %v2512 = vunpack.c.h.b16 %v2030
    %v2513 = vunpack.c.l.b16 %v2031
    %v2514 = vunpack.c.h.b16 %v2031
    %v2515 = vunpack.c.l.b16 %v2032
    %v2516 = vunpack.c.h.b16 %v2032
    %v2517 = vunpack.c.l.b16 %v2033
    %v2518 = vunpack.c.h.b16 %v2033
    %v2519 = vunpack.c.l.b16 %v2034
    %v2520 = vunpack.c.h.b16 %v2034
    %v2521 = vunpack.c.l.b16 %v2035
    %v2522 = vunpack.c.h.b16 %v2035
    %v2523 = vunpack.c.l.b16 %v2036
    %v2524 = vunpack.c.h.b16 %v2036
    %v2525 = vunpack.c.l.b16 %v2037
    %v2526 = vunpack.c.h.b16 %v2037
    %v2527 = vunpack.c.l.b16 %v2038
    %v2528 = vunpack.c.h.b16 %v2038
    %v2529 = vunpack.c.l.b16 %v2039
    %v2530 = vunpack.c.h.b16 %v2039
    %v2531 = vunpack.c.l.b16 %v2040
    %v2532 = vunpack.c.h.b16 %v2040
    %v2533 = vunpack.c.l.b16 %v2041
    %v2534 = vunpack.c.h.b16 %v2041
    %v2535 = vunpack.c.l.b16 %v2042
    %v2536 = vunpack.c.h.b16 %v2042
    %v2537 = vunpack.c.l.b16 %v2043
    %v2538 = vunpack.c.h.b16 %v2043
    %v2539 = vunpack.c.l.b16 %v2044
    %v2540 = vunpack.c.h.b16 %v2044
    %v2541 = vunpack.c.l.b16 %v2045
    %v2542 = vunpack.c.h.b16 %v2045
    %v2543 = vunpack.c.l.b16 %v2046
    %v2544 = vunpack.c.h.b16 %v2046
    %v2545 = vunpack.c.l.b16 %v2047
    %v2546 = vunpack.c.h.b16 %v2047
    %v2547 = vunpack.c.l.b16 %v2048
    %v2548 = vunpack.c.h.b16 %v2048
    %v2549 = vunpack.c.l.b16 %v2049
    %v2550 = vunpack.c.h.b16 %v2049
    %v2551 = vunpack.c.l.b16 %v2050
    %v2552 = vunpack.c.h.b16 %v2050
    %v2553 = vunpack.c.l.b16 %v2051
    %v2554 = vunpack.c.h.b16 %v2051
    %v2555 = vunpack.c.l.b16 %v2052
    %v2556 = vunpack.c.h.b16 %v2052
    %v2557 = vunpack.c.l.b16 %v2053
    %v2558 = vunpack.c.h.b16 %v2053
    %v2559 = vunpack.c.l.b16 %v2054
    %v2560 = vunpack.c.h.b16 %v2054
    %v2561 = vunpack.c.l.b16 %v2055
    %v2562 = vunpack.c.h.b16 %v2055
    %v2563 = vunpack.c.l.b16 %v2056
    %v2564 = vunpack.c.h.b16 %v2056
    %v2565 = vunpack.c.l.b16 %v2057
    %v2566 = vunpack.c.h.b16 %v2057
    %v2567 = vunpack.c.l.b16 %v2058
    %v2568 = vunpack.c.h.b16 %v2058
    %v2569 = vunpack.c.l.b16 %v2059
    %v2570 = vunpack.c.h.b16 %v2059
    %v2571 = vunpack.c.l.b16 %v2060
    %v2572 = vunpack.c.h.b16 %v2060
    %v2573 = vunpack.c.l.b16 %v2061
    %v2574 = vunpack.c.h.b16 %v2061
    %v2575 = vunpack.c.l.b16 %v2062
    %v2576 = vunpack.c.h.b16 %v2062
    %v2577 = vunpack.c.l.b16 %v2063
    %v2578 = vunpack.c.h.b16 %v2063
    %v2579 = vunpack.c.l.b16 %v2064
    %v2580 = vunpack.c.h.b16 %v2064
    %v2581 = vunpack.c.l.b16 %v2065
    %v2582 = vunpack.c.h.b16 %v2065
    %v2583 = vunpack.c.l.b16 %v2066
    %v2584 = vunpack.c.h.b16 %v2066
    %v2585 = vunpack.c.l.b16 %v2067
    %v2586 = vunpack.c.h.b16 %v2067
    %v2587 = vunpack.c.l.b16 %v2068
    %v2588 = vunpack.c.h.b16 %v2068
    %v2589 = vunpack.c.l.b16 %v2069
    %v2590 = vunpack.c.h.b16 %v2069
    %v2591 = vunpack.c.l.b16 %v2070
    %v2592 = vunpack.c.h.b16 %v2070
    %v2593 = vunpack.c.l.b16 %v2071
    %v2594 = vunpack.c.h.b16 %v2071
    %v2595 = vunpack.c.l.b16 %v2072
    %v2596 = vunpack.c.h.b16 %v2072
    %v2597 = vunpack.c.l.b16 %v2073
    %v2598 = vunpack.c.h.b16 %v2073
    %v2599 = vunpack.c.l.b16 %v2074
    %v2600 = vunpack.c.h.b16 %v2074
    %v2601 = vunpack.c.l.b16 %v2075
    %v2602 = vunpack.c.h.b16 %v2075
    %v2603 = vunpack.c.l.b16 %v2076
    %v2604 = vunpack.c.h.b16 %v2076
    %v2605 = vunpack.c.l.b16 %v2077
    %v2606 = vunpack.c.h.b16 %v2077
    %v2607 = vunpack.c.l.b16 %v2078
    %v2608 = vunpack.c.h.b16 %v2078
    %v2609 = vunpack.c.l.b16 %v2079
    %v2610 = vunpack.c.h.b16 %v2079
    %v2611 = vunpack.c.l.b16 %v2080
    %v2612 = vunpack.c.h.b16 %v2080
    %v2613 = vunpack.c.l.b16 %v2081
    %v2614 = vunpack.c.h.b16 %v2081
    %v2615 = vunpack.c.l.b16 %v2082
    %v2616 = vunpack.c.h.b16 %v2082
    %v2617 = vunpack.c.l.b16 %v2083
    %v2618 = vunpack.c.h.b16 %v2083
    %v2619 = vunpack.c.l.b16 %v2084
    %v2620 = vunpack.c.h.b16 %v2084
    %v2621 = vunpack.c.l.b16 %v2085
    %v2622 = vunpack.c.h.b16 %v2085
    %v2623 = vunpack.c.l.b16 %v2086
    %v2624 = vunpack.c.h.b16 %v2086
    %v2625 = vunpack.c.l.b16 %v2087
    %v2626 = vunpack.c.h.b16 %v2087
    %v2627 = vunpack.c.l.b16 %v2088
    %v2628 = vunpack.c.h.b16 %v2088
    %v2629 = vunpack.c.l.b16 %v2089
    %v2630 = vunpack.c.h.b16 %v2089
    %v2631 = vunpack.c.l.b16 %v2090
    %v2632 = vunpack.c.h.b16 %v2090
    %v2633 = vunpack.c.l.b16 %v2091
    %v2634 = vunpack.c.h.b16 %v2091
    %v2635 = vunpack.c.l.b16 %v2092
    %v2636 = vunpack.c.h.b16 %v2092
    %v2637 = vunpack.c.l.b16 %v2093
    %v2638 = vunpack.c.h.b16 %v2093
    %v2639 = vunpack.c.l.b16 %v2094
    %v2640 = vunpack.c.h.b16 %v2094
    %v2641 = vunpack.c.l.b16 %v2095
    %v2642 = vunpack.c.h.b16 %v2095
    %v2643 = vunpack.c.l.b16 %v2096
    %v2644 = vunpack.c.h.b16 %v2096
    %v2645 = vunpack.c.l.b16 %v2097
    %v2646 = vunpack.c.h.b16 %v2097
    %v2647 = vunpack.c.l.b16 %v2098
    %v2648 = vunpack.c.h.b16 %v2098
    %v2649 = vunpack.c.l.b16 %v2099
    %v2650 = vunpack.c.h.b16 %v2099
    %v2651 = vunpack.c.l.b16 %v2100
    %v2652 = vunpack.c.h.b16 %v2100
    %v2653 = vunpack.c.l.b16 %v2101
    %v2654 = vunpack.c.h.b16 %v2101
    %v2655 = vunpack.c.l.b16 %v2102
    %v2656 = vunpack.c.h.b16 %v2102
    %v2657 = vunpack.c.l.b16 %v2103
    %v2658 = vunpack.c.h.b16 %v2103
    %v2659 = vunpack.c.l.b16 %v2104
    %v2660 = vunpack.c.h.b16 %v2104
    %v2661 = vunpack.c.l.b16 %v2105
    %v2662 = vunpack.c.h.b16 %v2105
    %v2663 = vunpack.c.l.b16 %v2106
    %v2664 = vunpack.c.h.b16 %v2106
    %v2665 = vunpack.c.l.b16 %v2107
    %v2666 = vunpack.c.h.b16 %v2107
    %v2667 = vunpack.c.l.b16 %v2108
    %v2668 = vunpack.c.h.b16 %v2108
    %v2669 = vunpack.c.l.b16 %v2109
    %v2670 = vunpack.c.h.b16 %v2109
    %v2671 = vunpack.c.l.b16 %v2110
    %v2672 = vunpack.c.h.b16 %v2110
    %v2673 = vunpack.c.l.b16 %v2111
    %v2674 = vunpack.c.h.b16 %v2111
    %v2675 = vunpack.c.l.b16 %v2112
    %v2676 = vunpack.c.h.b16 %v2112
    %v2677 = vunpack.c.l.b16 %v2113
    %v2678 = vunpack.c.h.b16 %v2113
    %v2679 = vunpack.c.l.b16 %v2114
    %v2680 = vunpack.c.h.b16 %v2114
    %v2681 = vunpack.c.l.b16 %v2115
    %v2682 = vunpack.c.h.b16 %v2115
    %v2683 = vunpack.c.l.b16 %v2116
    %v2684 = vunpack.c.h.b16 %v2116
    %v2685 = vunpack.c.l.b16 %v2117
    %v2686 = vunpack.c.h.b16 %v2117
    %v2687 = vunpack.c.l.b16 %v2118
    %v2688 = vunpack.c.h.b16 %v2118
    %v2689 = vunpack.c.l.b16 %v2119
    %v2690 = vunpack.c.h.b16 %v2119
    %v2691 = vunpack.c.l.b16 %v2120
    %v2692 = vunpack.c.h.b16 %v2120
    %v2693 = vunpack.c.l.b16 %v2121
    %v2694 = vunpack.c.h.b16 %v2121
    %v2695 = vunpack.c.l.b16 %v2122
    %v2696 = vunpack.c.h.b16 %v2122
    %v2697 = vunpack.c.l.b16 %v2123
    %v2698 = vunpack.c.h.b16 %v2123
    %v2699 = vunpack.c.l.b16 %v2124
    %v2700 = vunpack.c.h.b16 %v2124
    %v2701 = vunpack.c.l.b16 %v2125
    %v2702 = vunpack.c.h.b16 %v2125
    %v2703 = vunpack.c.l.b16 %v2126
    %v2704 = vunpack.c.h.b16 %v2126
    %v2705 = vunpack.c.l.b16 %v2127
    %v2706 = vunpack.c.h.b16 %v2127
    %v2707 = vunpack.c.l.b16 %v2128
    %v2708 = vunpack.c.h.b16 %v2128
    %v2709 = vunpack.c.l.b16 %v2129
    %v2710 = vunpack.c.h.b16 %v2129
    %v2711 = vunpack.c.l.b16 %v2130
    %v2712 = vunpack.c.h.b16 %v2130
    %v2713 = vunpack.c.l.b16 %v2131
    %v2714 = vunpack.c.h.b16 %v2131
    %v2715 = vunpack.c.l.b16 %v2132
    %v2716 = vunpack.c.h.b16 %v2132
    %v2717 = vunpack.c.l.b16 %v2133
    %v2718 = vunpack.c.h.b16 %v2133
    %v2719 = vunpack.c.l.b16 %v2134
    %v2720 = vunpack.c.h.b16 %v2134
    %v2721 = vunpack.c.l.b16 %v2135
    %v2722 = vunpack.c.h.b16 %v2135
    %v2723 = vunpack.c.l.b16 %v2136
    %v2724 = vunpack.c.h.b16 %v2136
    %v2725 = vunpack.c.l.b16 %v2137
    %v2726 = vunpack.c.h.b16 %v2137
    %v2727 = vunpack.c.l.b16 %v2138
    %v2728 = vunpack.c.h.b16 %v2138
    %v2729 = vunpack.c.l.b16 %v2139
    %v2730 = vunpack.c.h.b16 %v2139
    %v2731 = vunpack.c.l.b16 %v2140
    %v2732 = vunpack.c.h.b16 %v2140
    %v2733 = vunpack.c.l.b16 %v2141
    %v2734 = vunpack.c.h.b16 %v2141
    %v2735 = vunpack.c.l.b16 %v2142
    %v2736 = vunpack.c.h.b16 %v2142
    %v2737 = vunpack.c.l.b16 %v2143
    %v2738 = vunpack.c.h.b16 %v2143
    %v2739 = vunpack.c.l.b16 %v2144
    %v2740 = vunpack.c.h.b16 %v2144
    %v2741 = vunpack.c.l.b16 %v2145
    %v2742 = vunpack.c.h.b16 %v2145
    %v2743 = vunpack.c.l.b16 %v2146
    %v2744 = vunpack.c.h.b16 %v2146
    %v2745 = vunpack.c.l.b16 %v2147
    %v2746 = vunpack.c.h.b16 %v2147
    %v2747 = vunpack.c.l.b16 %v2148
    %v2748 = vunpack.c.h.b16 %v2148
    %v2749 = vunpack.c.l.b16 %v2149
    %v2750 = vunpack.c.h.b16 %v2149
    %v2751 = vunpack.c.l.b16 %v2150
    %v2752 = vunpack.c.h.b16 %v2150
    %v2753 = vunpack.c.l.b16 %v2151
    %v2754 = vunpack.c.h.b16 %v2151
    %v2755 = vunpack.c.l.b16 %v2152
    %v2756 = vunpack.c.h.b16 %v2152
    %v2757 = vunpack.c.l.b16 %v2153
    %v2758 = vunpack.c.h.b16 %v2153
    %v2759 = vunpack.c.l.b16 %v2154
    %v2760 = vunpack.c.h.b16 %v2154
    %v2761 = vunpack.c.l.b16 %v2155
    %v2762 = vunpack.c.h.b16 %v2155
    %v2763 = vunpack.c.l.b16 %v2156
    %v2764 = vunpack.c.h.b16 %v2156
    %v2765 = vpack.c.b16 %v2387, %v2381
    %v2766 = vpack.c.b16 %v2388, %v2382
    %v2767 = vpack.c.b16 %v2389, %v2383
    %v2768 = vpack.c.b16 %v2390, %v2384
    %v2769 = vpack.c.b16 %v2391, %v2385
    %v2770 = vpack.c.b16 %v2392, %v2386
    %v2771 = vpack.c.b16 %v2399, %v2393
    %v2772 = vpack.c.b16 %v2400, %v2394
    %v2773 = vpack.c.b16 %v2401, %v2395
    %v2774 = vpack.c.b16 %v2402, %v2396
    %v2775 = vpack.c.b16 %v2403, %v2397
    %v2776 = vpack.c.b16 %v2404, %v2398
    %v2777 = vpack.c.b16 %v2411, %v2405
    %v2778 = vpack.c.b16 %v2412, %v2406
    %v2779 = vpack.c.b16 %v2413, %v2407
    %v2780 = vpack.c.b16 %v2414, %v2408
    %v2781 = vpack.c.b16 %v2415, %v2409
    %v2782 = vpack.c.b16 %v2416, %v2410
    %v2783 = vpack.c.b16 %v2423, %v2417
    %v2784 = vpack.c.b16 %v2424, %v2418
    %v2785 = vpack.c.b16 %v2425, %v2419
    %v2786 = vpack.c.b16 %v2426, %v2420
    %v2787 = vpack.c.b16 %v2427, %v2421
    %v2788 = vpack.c.b16 %v2428, %v2422
    %v2789 = vpack.c.b16 %v2435, %v2429
    %v2790 = vpack.c.b16 %v2436, %v2430
    %v2791 = vpack.c.b16 %v2437, %v2431
    %v2792 = vpack.c.b16 %v2438, %v2432
    %v2793 = vpack.c.b16 %v2439, %v2433
    %v2794 = vpack.c.b16 %v2440, %v2434
    %v2795 = vpack.c.b16 %v2447, %v2441
    %v2796 = vpack.c.b16 %v2448, %v2442
    %v2797 = vpack.c.b16 %v2449, %v2443
    %v2798 = vpack.c.b16 %v2450, %v2444
    %v2799 = vpack.c.b16 %v2451, %v2445
    %v2800 = vpack.c.b16 %v2452, %v2446
    %v2801 = vpack.c.b16 %v2459, %v2453
    %v2802 = vpack.c.b16 %v2460, %v2454
    %v2803 = vpack.c.b16 %v2461, %v2455
    %v2804 = vpack.c.b16 %v2462, %v2456
    %v2805 = vpack.c.b16 %v2463, %v2457
    %v2806 = vpack.c.b16 %v2464, %v2458
    %v2807 = vpack.c.b16 %v2471, %v2465
    %v2808 = vpack.c.b16 %v2472, %v2466
    %v2809 = vpack.c.b16 %v2473, %v2467
    %v2810 = vpack.c.b16 %v2474, %v2468
    %v2811 = vpack.c.b16 %v2475, %v2469
    %v2812 = vpack.c.b16 %v2476, %v2470
    %v2813 = vpack.c.b16 %v2483, %v2477
    %v2814 = vpack.c.b16 %v2484, %v2478
    %v2815 = vpack.c.b16 %v2485, %v2479
    %v2816 = vpack.c.b16 %v2486, %v2480
    %v2817 = vpack.c.b16 %v2487, %v2481
    %v2818 = vpack.c.b16 %v2488, %v2482
    %v2819 = vpack.c.b16 %v2495, %v2489
    %v2820 = vpack.c.b16 %v2496, %v2490
    %v2821 = vpack.c.b16 %v2497, %v2491
    %v2822 = vpack.c.b16 %v2498, %v2492
    %v2823 = vpack.c.b16 %v2499, %v2493
    %v2824 = vpack.c.b16 %v2500, %v2494
    %v2825 = vpack.c.b16 %v2507, %v2501
    %v2826 = vpack.c.b16 %v2508, %v2502
    %v2827 = vpack.c.b16 %v2509, %v2503
    %v2828 = vpack.c.b16 %v2510, %v2504
    %v2829 = vpack.c.b16 %v2511, %v2505
    %v2830 = vpack.c.b16 %v2512, %v2506
    %v2831 = vpack.c.b16 %v2519, %v2513
    %v2832 = vpack.c.b16 %v2520, %v2514
    %v2833 = vpack.c.b16 %v2521, %v2515
    %v2834 = vpack.c.b16 %v2522, %v2516
    %v2835 = vpack.c.b16 %v2523, %v2517
    %v2836 = vpack.c.b16 %v2524, %v2518
    %v2837 = vpack.c.b16 %v2531, %v2525
    %v2838 = vpack.c.b16 %v2532, %v2526
    %v2839 = vpack.c.b16 %v2533, %v2527
    %v2840 = vpack.c.b16 %v2534, %v2528
    %v2841 = vpack.c.b16 %v2535, %v2529
    %v2842 = vpack.c.b16 %v2536, %v2530
    %v2843 = vpack.c.b16 %v2543, %v2537
    %v2844 = vpack.c.b16 %v2544, %v2538
    %v2845 = vpack.c.b16 %v2545, %v2539
    %v2846 = vpack.c.b16 %v2546, %v2540
    %v2847 = vpack.c.b16 %v2547, %v2541
    %v2848 = vpack.c.b16 %v2548, %v2542
    %v2849 = vpack.c.b16 %v2555, %v2549
    %v2850 = vpack.c.b16 %v2556, %v2550
    %v2851 = vpack.c.b16 %v2557, %v2551
    %v2852 = vpack.c.b16 %v2558, %v2552
    %v2853 = vpack.c.b16 %v2559, %v2553
    %v2854 = vpack.c.b16 %v2560, %v2554
    %v2855 = vpack.c.b16 %v2567, %v2561
    %v2856 = vpack.c.b16 %v2568, %v2562
    %v2857 = vpack.c.b16 %v2569, %v2563
    %v2858 = vpack.c.b16 %v2570, %v2564
    %v2859 = vpack.c.b16 %v2571, %v2565
    %v2860 = vpack.c.b16 %v2572, %v2566
    %v2861 = vpack.c.b16 %v2579, %v2573
    %v2862 = vpack.c.b16 %v2580, %v2574
    %v2863 = vpack.c.b16 %v2581, %v2575
    %v2864 = vpack.c.b16 %v2582, %v2576
    %v2865 = vpack.c.b16 %v2583, %v2577
    %v2866 = vpack.c.b16 %v2584, %v2578
    %v2867 = vpack.c.b16 %v2591, %v2585
    %v2868 = vpack.c.b16 %v2592, %v2586
    %v2869 = vpack.c.b16 %v2593, %v2587
    %v2870 = vpack.c.b16 %v2594, %v2588
    %v2871 = vpack.c.b16 %v2595, %v2589
    %v2872 = vpack.c.b16 %v2596, %v2590
    %v2873 = vpack.c.b16 %v2603, %v2597
    %v2874 = vpack.c.b16 %v2604, %v2598
    %v2875 = vpack.c.b16 %v2605, %v2599
    %v2876 = vpack.c.b16 %v2606, %v2600
    %v2877 = vpack.c.b16 %v2607, %v2601
    %v2878 = vpack.c.b16 %v2608, %v2602
    %v2879 = vpack.c.b16 %v2615, %v2609
    %v2880 = vpack.c.b16 %v2616, %v2610
    %v2881 = vpack.c.b16 %v2617, %v2611
    %v2882 = vpack.c.b16 %v2618, %v2612
    %v2883 = vpack.c.b16 %v2619, %v2613
    %v2884 = vpack.c.b16 %v2620, %v2614
    %v2885 = vpack.c.b16 %v2627, %v2621
    %v2886 = vpack.c.b16 %v2628, %v2622
    %v2887 = vpack.c.b16 %v2629, %v2623
    %v2888 = vpack.c.b16 %v2630, %v2624
    %v2889 = vpack.c.b16 %v2631, %v2625
    %v2890 = vpack.c.b16 %v2632, %v2626
    %v2891 = vpack.c.b16 %v2639, %v2633
    %v2892 = vpack.c.b16 %v2640, %v2634
    %v2893 = vpack.c.b16 %v2641, %v2635
    %v2894 = vpack.c.b16 %v2642, %v2636
    %v2895 = vpack.c.b16 %v2643, %v2637
    %v2896 = vpack.c.b16 %v2644, %v2638
    %v2897 = vpack.c.b16 %v2651, %v2645
    %v2898 = vpack.c.b16 %v2652, %v2646
    %v2899 = vpack.c.b16 %v2653, %v2647
    %v2900 = vpack.c.b16 %v2654, %v2648
    %v2901 = vpack.c.b16 %v2655, %v2649
    %v2902 = vpack.c.b16 %v2656, %v2650
    %v2903 = vpack.c.b16 %v2663, %v2657
    %v2904 = vpack.c.b16 %v2664, %v2658
    %v2905 = vpack.c.b16 %v2665, %v2659
    %v2906 = vpack.c.b16 %v2666, %v2660
    %v2907 = vpack.c.b16 %v2667, %v2661
    %v2908 = vpack.c.b16 %v2668, %v2662
    %v2909 = vpack.c.b16 %v2675, %v2669
    %v2910 = vpack.c.b16 %v2676, %v2670
    %v2911 = vpack.c.b16 %v2677, %v2671
    %v2912 = vpack.c.b16 %v2678, %v2672
    %v2913 = vpack.c.b16 %v2679, %v2673
    %v2914 = vpack.c.b16 %v2680, %v2674
    %v2915 = vpack.c.b16 %v2687, %v2681
    %v2916 = vpack.c.b16 %v2688, %v2682
    %v2917 = vpack.c.b16 %v2689, %v2683
    %v2918 = vpack.c.b16 %v2690, %v2684
    %v2919 = vpack.c.b16 %v2691, %v2685
    %v2920 = vpack.c.b16 %v2692, %v2686
    %v2921 = vpack.c.b16 %v2699, %v2693
    %v2922 = vpack.c.b16 %v2700, %v2694
    %v2923 = vpack.c.b16 %v2701, %v2695
    %v2924 = vpack.c.b16 %v2702, %v2696
    %v2925 = vpack.c.b16 %v2703, %v2697
    %v2926 = vpack.c.b16 %v2704, %v2698
    %v2927 = vpack.c.b16 %v2711, %v2705
    %v2928 = vpack.c.b16 %v2712, %v2706
    %v2929 = vpack.c.b16 %v2713, %v2707
    %v2930 = vpack.c.b16 %v2714, %v2708
    %v2931 = vpack.c.b16 %v2715, %v2709
    %v2932 = vpack.c.b16 %v2716, %v2710
    %v2933 = vpack.c.b16 %v2723, %v2717
    %v2934 = vpack.c.b16 %v2724, %v2718
    %v2935 = vpack.c.b16 %v2725, %v2719
    %v2936 = vpack.c.b16 %v2726, %v2720
    %v2937 = vpack.c.b16 %v2727, %v2721
    %v2938 = vpack.c.b16 %v2728, %v2722
    %v2939 = vpack.c.b16 %v2735, %v2729
    %v2940 = vpack.c.b16 %v2736, %v2730
    %v2941 = vpack.c.b16 %v2737, %v2731
    %v2942 = vpack.c.b16 %v2738, %v2732
    %v2943 = vpack.c.b16 %v2739, %v2733
    %v2944 = vpack.c.b16 %v2740, %v2734
    %v2945 = vpack.c.b16 %v2747, %v2741
    %v2946 = vpack.c.b16 %v2748, %v2742
    %v2947 = vpack.c.b16 %v2749, %v2743
    %v2948 = vpack.c.b16 %v2750, %v2744
    %v2949 = vpack.c.b16 %v2751, %v2745
    %v2950 = vpack.c.b16 %v2752, %v2746
    %v2951 = vpack.c.b16 %v2759, %v2753
    %v2952 = vpack.c.b16 %v2760, %v2754
    %v2953 = vpack.c.b16 %v2761, %v2755
    %v2954 = vpack.c.b16 %v2762, %v2756
    %v2955 = vpack.c.b16 %v2763, %v2757
    %v2956 = vpack.c.b16 %v2764, %v2758
    %3149 = vmatprep.subr.bf16.mxu0 %v2766
    %3150 = vmatpush1.bf16.msra.mxu0 %v2765
    %3151 = vmatprep.subr.bf16.mxu0 %v2772
    %3152 = vmatpush1.bf16.msra.mxu0 %v2771
    %3153 = vmatprep.subr.bf16.mxu0 %v2778
    %3154 = vmatpush1.bf16.msra.mxu0 %v2777
    %3155 = vmatprep.subr.bf16.mxu0 %v2784
    %3156 = vmatpush1.bf16.msra.mxu0 %v2783
    %3157 = vmatprep.subr.bf16.mxu0 %v2790
    %3158 = vmatpush1.bf16.msra.mxu0 %v2789
    %3159 = vmatprep.subr.bf16.mxu0 %v2796
    %3160 = vmatpush1.bf16.msra.mxu0 %v2795
    %3161 = vmatprep.subr.bf16.mxu0 %v2802
    %3162 = vmatpush1.bf16.msra.mxu0 %v2801
    %3163 = vmatprep.subr.bf16.mxu0 %v2808
    %3164 = vmatpush1.bf16.msra.mxu0 %v2807
    %3165 = vmatprep.subr.bf16.mxu0 %v2814
    %3166 = vmatpush1.bf16.msra.mxu0 %v2813
    %3167 = vmatprep.subr.bf16.mxu0 %v2820
    %3168 = vmatpush1.bf16.msra.mxu0 %v2819
    %3169 = vmatprep.subr.bf16.mxu0 %v2826
    %3170 = vmatpush1.bf16.msra.mxu0 %v2825
    %3171 = vmatprep.subr.bf16.mxu0 %v2832
    %3172 = vmatpush1.bf16.msra.mxu0 %v2831
    %3173 = vmatprep.subr.bf16.mxu0 %v2838
    %3174 = vmatpush1.bf16.msra.mxu0 %v2837
    %3175 = vmatprep.subr.bf16.mxu0 %v2844
    %3176 = vmatpush1.bf16.msra.mxu0 %v2843
    %3177 = vmatprep.subr.bf16.mxu0 %v2850
    %3178 = vmatpush1.bf16.msra.mxu0 %v2849
    %3179 = vmatprep.subr.bf16.mxu0 %v2856
    %3180 = vmatpush1.bf16.msra.mxu0 %v2855
    %3181 = vmatprep.mubr.bf16.mxu0 %v1962
    %3182 = vmatmul.mubr.bf16.gmra.mrb[0].mxu0 %v1961
    %v3183 = vpop.f32.mrb[0].mxu0
    %v3184 = vadd.f32 %v2162, %v3183
    %v3185 = vpop.f32.mrb[0].mxu0
    %v3186 = vadd.f32 %v2166, %v3185
    %v3187 = vpop.f32.mrb[0].mxu0
    %v3188 = vpop.f32.mrb[0].mxu0
    %3189 = vdwg.mxu0
    %3190 = vmatprep.subr.bf16.mxu0 %v2862
    %3191 = vmatpush1.bf16.msra.mxu0 %v2861
    %3192 = vmatprep.subr.bf16.mxu0 %v2868
    %3193 = vmatpush1.bf16.msra.mxu0 %v2867
    %3194 = vmatprep.subr.bf16.mxu0 %v2874
    %3195 = vmatpush1.bf16.msra.mxu0 %v2873
    %3196 = vmatprep.subr.bf16.mxu0 %v2880
    %3197 = vmatpush1.bf16.msra.mxu0 %v2879
    %3198 = vmatprep.subr.bf16.mxu0 %v2886
    %3199 = vmatpush1.bf16.msra.mxu0 %v2885
    %3200 = vmatprep.subr.bf16.mxu0 %v2892
    %3201 = vmatpush1.bf16.msra.mxu0 %v2891
    %3202 = vmatprep.subr.bf16.mxu0 %v2898
    %3203 = vmatpush1.bf16.msra.mxu0 %v2897
    %3204 = vmatprep.subr.bf16.mxu0 %v2904
    %3205 = vmatpush1.bf16.msra.mxu0 %v2903
    %3206 = vmatprep.subr.bf16.mxu0 %v2910
    %3207 = vmatpush1.bf16.msra.mxu0 %v2909
    %3208 = vmatprep.subr.bf16.mxu0 %v2916
    %3209 = vmatpush1.bf16.msra.mxu0 %v2915
    %3210 = vmatprep.subr.bf16.mxu0 %v2922
    %3211 = vmatpush1.bf16.msra.mxu0 %v2921
    %3212 = vmatprep.subr.bf16.mxu0 %v2928
    %3213 = vmatpush1.bf16.msra.mxu0 %v2927
    %3214 = vmatprep.subr.bf16.mxu0 %v2934
    %3215 = vmatpush1.bf16.msra.mxu0 %v2933
    %3216 = vmatprep.subr.bf16.mxu0 %v2940
    %3217 = vmatpush1.bf16.msra.mxu0 %v2939
    %3218 = vmatprep.subr.bf16.mxu0 %v2946
    %3219 = vmatpush1.bf16.msra.mxu0 %v2945
    %3220 = vmatprep.subr.bf16.mxu0 %v2952
    %3221 = vmatpush1.bf16.msra.mxu0 %v2951
    %3222 = vmatprep.mubr.bf16.mxu0 %v1964
    %3223 = vmatmul.mubr.bf16.gmra.mrb[0].mxu0 %v1963
    %v3224 = vpop.f32.mrb[0].mxu0
    %v3225 = vadd.f32 %v3184, %v3224
    %v3226 = vpop.f32.mrb[0].mxu0
    %v3227 = vadd.f32 %v3186, %v3226
    %v3228 = vpop.f32.mrb[0].mxu0
    %v3229 = vpop.f32.mrb[0].mxu0
    %3230 = vdwg.mxu0
    %3231 = vmatprep.subr.bf16.mxu0 %v2768
    %3232 = vmatpush1.bf16.msra.mxu0 %v2767
    %3233 = vmatprep.subr.bf16.mxu0 %v2774
    %3234 = vmatpush1.bf16.msra.mxu0 %v2773
    %3235 = vmatprep.subr.bf16.mxu0 %v2780
    %3236 = vmatpush1.bf16.msra.mxu0 %v2779
    %3237 = vmatprep.subr.bf16.mxu0 %v2786
    %3238 = vmatpush1.bf16.msra.mxu0 %v2785
    %3239 = vmatprep.subr.bf16.mxu0 %v2792
    %3240 = vmatpush1.bf16.msra.mxu0 %v2791
    %3241 = vmatprep.subr.bf16.mxu0 %v2798
    %3242 = vmatpush1.bf16.msra.mxu0 %v2797
    %3243 = vmatprep.subr.bf16.mxu0 %v2804
    %3244 = vmatpush1.bf16.msra.mxu0 %v2803
    %3245 = vmatprep.subr.bf16.mxu0 %v2810
    %3246 = vmatpush1.bf16.msra.mxu0 %v2809
    %3247 = vmatprep.subr.bf16.mxu0 %v2816
    %3248 = vmatpush1.bf16.msra.mxu0 %v2815
    %3249 = vmatprep.subr.bf16.mxu0 %v2822
    %3250 = vmatpush1.bf16.msra.mxu0 %v2821
    %3251 = vmatprep.subr.bf16.mxu0 %v2828
    %3252 = vmatpush1.bf16.msra.mxu0 %v2827
    %3253 = vmatprep.subr.bf16.mxu0 %v2834
    %3254 = vmatpush1.bf16.msra.mxu0 %v2833
    %3255 = vmatprep.subr.bf16.mxu0 %v2840
    %3256 = vmatpush1.bf16.msra.mxu0 %v2839
    %3257 = vmatprep.subr.bf16.mxu0 %v2846
    %3258 = vmatpush1.bf16.msra.mxu0 %v2845
    %3259 = vmatprep.subr.bf16.mxu0 %v2852
    %3260 = vmatpush1.bf16.msra.mxu0 %v2851
    %3261 = vmatprep.subr.bf16.mxu0 %v2858
    %3262 = vmatpush1.bf16.msra.mxu0 %v2857
    %3263 = vmatprep.mubr.bf16.mxu0 %v1962
    %3264 = vmatmul.mubr.bf16.gmra.mrb[0].mxu0 %v1961
    %v3265 = vpop.f32.mrb[0].mxu0
    %v3266 = vadd.f32 %v2170, %v3265
    %v3267 = vpop.f32.mrb[0].mxu0
    %v3268 = vadd.f32 %v2174, %v3267
    %v3269 = vpop.f32.mrb[0].mxu0
    %v3270 = vpop.f32.mrb[0].mxu0
    %3271 = vdwg.mxu0
    %3272 = vmatprep.subr.bf16.mxu0 %v2864
    %3273 = vmatpush1.bf16.msra.mxu0 %v2863
    %3274 = vmatprep.subr.bf16.mxu0 %v2870
    %3275 = vmatpush1.bf16.msra.mxu0 %v2869
    %3276 = vmatprep.subr.bf16.mxu0 %v2876
    %3277 = vmatpush1.bf16.msra.mxu0 %v2875
    %3278 = vmatprep.subr.bf16.mxu0 %v2882
    %3279 = vmatpush1.bf16.msra.mxu0 %v2881
    %3280 = vmatprep.subr.bf16.mxu0 %v2888
    %3281 = vmatpush1.bf16.msra.mxu0 %v2887
    %3282 = vmatprep.subr.bf16.mxu0 %v2894
    %3283 = vmatpush1.bf16.msra.mxu0 %v2893
    %3284 = vmatprep.subr.bf16.mxu0 %v2900
    %3285 = vmatpush1.bf16.msra.mxu0 %v2899
    %3286 = vmatprep.subr.bf16.mxu0 %v2906
    %3287 = vmatpush1.bf16.msra.mxu0 %v2905
    %3288 = vmatprep.subr.bf16.mxu0 %v2912
    %3289 = vmatpush1.bf16.msra.mxu0 %v2911
    %3290 = vmatprep.subr.bf16.mxu0 %v2918
    %3291 = vmatpush1.bf16.msra.mxu0 %v2917
    %3292 = vmatprep.subr.bf16.mxu0 %v2924
    %3293 = vmatpush1.bf16.msra.mxu0 %v2923
    %3294 = vmatprep.subr.bf16.mxu0 %v2930
    %3295 = vmatpush1.bf16.msra.mxu0 %v2929
    %3296 = vmatprep.subr.bf16.mxu0 %v2936
    %3297 = vmatpush1.bf16.msra.mxu0 %v2935
    %3298 = vmatprep.subr.bf16.mxu0 %v2942
    %3299 = vmatpush1.bf16.msra.mxu0 %v2941
    %3300 = vmatprep.subr.bf16.mxu0 %v2948
    %3301 = vmatpush1.bf16.msra.mxu0 %v2947
    %3302 = vmatprep.subr.bf16.mxu0 %v2954
    %3303 = vmatpush1.bf16.msra.mxu0 %v2953
    %3304 = vmatprep.mubr.bf16.mxu0 %v1964
    %3305 = vmatmul.mubr.bf16.gmra.mrb[0].mxu0 %v1963
    %v3306 = vpop.f32.mrb[0].mxu0
    %v3307 = vadd.f32 %v3266, %v3306
    %v3308 = vpop.f32.mrb[0].mxu0
    %v3309 = vadd.f32 %v3268, %v3308
    %v3310 = vpop.f32.mrb[0].mxu0
    %v3311 = vpop.f32.mrb[0].mxu0
    %3312 = vdwg.mxu0
    %3313 = vmatprep.subr.bf16.mxu0 %v2770
    %3314 = vmatpush1.bf16.msra.mxu0 %v2769
    %3315 = vmatprep.subr.bf16.mxu0 %v2776
    %3316 = vmatpush1.bf16.msra.mxu0 %v2775
    %3317 = vmatprep.subr.bf16.mxu0 %v2782
    %3318 = vmatpush1.bf16.msra.mxu0 %v2781
    %3319 = vmatprep.subr.bf16.mxu0 %v2788
    %3320 = vmatpush1.bf16.msra.mxu0 %v2787
    %3321 = vmatprep.subr.bf16.mxu0 %v2794
    %3322 = vmatpush1.bf16.msra.mxu0 %v2793
    %3323 = vmatprep.subr.bf16.mxu0 %v2800
    %3324 = vmatpush1.bf16.msra.mxu0 %v2799
    %3325 = vmatprep.subr.bf16.mxu0 %v2806
    %3326 = vmatpush1.bf16.msra.mxu0 %v2805
    %3327 = vmatprep.subr.bf16.mxu0 %v2812
    %3328 = vmatpush1.bf16.msra.mxu0 %v2811
    %3329 = vmatprep.subr.bf16.mxu0 %v2818
    %3330 = vmatpush1.bf16.msra.mxu0 %v2817
    %3331 = vmatprep.subr.bf16.mxu0 %v2824
    %3332 = vmatpush1.bf16.msra.mxu0 %v2823
    %3333 = vmatprep.subr.bf16.mxu0 %v2830
    %3334 = vmatpush1.bf16.msra.mxu0 %v2829
    %3335 = vmatprep.subr.bf16.mxu0 %v2836
    %3336 = vmatpush1.bf16.msra.mxu0 %v2835
    %3337 = vmatprep.subr.bf16.mxu0 %v2842
    %3338 = vmatpush1.bf16.msra.mxu0 %v2841
    %3339 = vmatprep.subr.bf16.mxu0 %v2848
    %3340 = vmatpush1.bf16.msra.mxu0 %v2847
    %3341 = vmatprep.subr.bf16.mxu0 %v2854
    %3342 = vmatpush1.bf16.msra.mxu0 %v2853
    %3343 = vmatprep.subr.bf16.mxu0 %v2860
    %3344 = vmatpush1.bf16.msra.mxu0 %v2859
    %3345 = vmatprep.mubr.bf16.mxu0 %v1962
    %3346 = vmatmul.mubr.bf16.gmra.mrb[0].mxu0 %v1961
    %v3347 = vpop.f32.mrb[0].mxu0
    %v3348 = vadd.f32 %v2178, %v3347
    %v3349 = vpop.f32.mrb[0].mxu0
    %v3350 = vadd.f32 %v2182, %v3349
    %v3351 = vpop.f32.mrb[0].mxu0
    %v3352 = vpop.f32.mrb[0].mxu0
    %3353 = vdwg.mxu0
    %3354 = vmatprep.subr.bf16.mxu0 %v2866
    %3355 = vmatpush1.bf16.msra.mxu0 %v2865
    %3356 = vmatprep.subr.bf16.mxu0 %v2872
    %3357 = vmatpush1.bf16.msra.mxu0 %v2871
    %3358 = vmatprep.subr.bf16.mxu0 %v2878
    %3359 = vmatpush1.bf16.msra.mxu0 %v2877
    %3360 = vmatprep.subr.bf16.mxu0 %v2884
    %3361 = vmatpush1.bf16.msra.mxu0 %v2883
    %3362 = vmatprep.subr.bf16.mxu0 %v2890
    %3363 = vmatpush1.bf16.msra.mxu0 %v2889
    %3364 = vmatprep.subr.bf16.mxu0 %v2896
    %3365 = vmatpush1.bf16.msra.mxu0 %v2895
    %3366 = vmatprep.subr.bf16.mxu0 %v2902
    %3367 = vmatpush1.bf16.msra.mxu0 %v2901
    %3368 = vmatprep.subr.bf16.mxu0 %v2908
    %3369 = vmatpush1.bf16.msra.mxu0 %v2907
    %3370 = vmatprep.subr.bf16.mxu0 %v2914
    %3371 = vmatpush1.bf16.msra.mxu0 %v2913
    %3372 = vmatprep.subr.bf16.mxu0 %v2920
    %3373 = vmatpush1.bf16.msra.mxu0 %v2919
    %3374 = vmatprep.subr.bf16.mxu0 %v2926
    %3375 = vmatpush1.bf16.msra.mxu0 %v2925
    %3376 = vmatprep.subr.bf16.mxu0 %v2932
    %3377 = vmatpush1.bf16.msra.mxu0 %v2931
    %3378 = vmatprep.subr.bf16.mxu0 %v2938
    %3379 = vmatpush1.bf16.msra.mxu0 %v2937
    %3380 = vmatprep.subr.bf16.mxu0 %v2944
    %3381 = vmatpush1.bf16.msra.mxu0 %v2943
    %3382 = vmatprep.subr.bf16.mxu0 %v2950
    %3383 = vmatpush1.bf16.msra.mxu0 %v2949
    %3384 = vmatprep.subr.bf16.mxu0 %v2956
    %3385 = vmatpush1.bf16.msra.mxu0 %v2955
    %3386 = vmatprep.mubr.bf16.mxu0 %v1964
    %3387 = vmatmul.mubr.bf16.gmra.mrb[0].mxu0 %v1963
    %v3388 = vpop.f32.mrb[0].mxu0
    %v3389 = vadd.f32 %v3348, %v3388
    %v3390 = vpop.f32.mrb[0].mxu0
    %v3391 = vadd.f32 %v3350, %v3390
    %v3392 = vpop.f32.mrb[0].mxu0
    %v3393 = vpop.f32.mrb[0].mxu0
    %3394 = vdwg.mxu0
    %3395 = vst [vmem:[#allocation10] sm:$0xff] %v3225
    %3396 = vst [vmem:[#allocation10 + $0x8] sm:$0xff] %v3227
    %3397 = vst [vmem:[#allocation10 + $0x10] sm:$0xff] %v3307
    %3398 = vst [vmem:[#allocation10 + $0x18] sm:$0xff] %v3309
    %3399 = vst [vmem:[#allocation10 + $0x20] sm:$0xff] %v3389
    %3400 = vst [vmem:[#allocation10 + $0x28] sm:$0xff] %v3391
    // Predicated region
    $region34: #{tpu_custom_call.1} parent=1 // pred_check
      _
    $region35: #{tpu_custom_call.1} parent=1 // pred_check_branch
      %3402 = sbr.rel (0) target = $region37
    $region36: #{tpu_custom_call.1} parent=1 // pred_region
      %s3404 = ssub.s32 768, 768
      %3405 = vsyncadd [#allocation6], %s3404
      %s3407 = sshll.u32 [#allocation10], 4
      %s3408 = int_to_ptr.vmem [resolvable:$true] %s3407
      %3410 = dma.vmem_to_hbm [thread:$0]  %s3408, 768, %s6, [#allocation6]
    $region37: #{tpu_custom_call.1} parent=1 // pred_fallthru
      _
    // Predicated region
    $region38: #{tpu_custom_call.1} parent=1 // pred_check
      _
    $region39: #{tpu_custom_call.1} parent=1 // pred_check_branch
      %3412 = sbr.rel (0) target = $region41
    $region40: #{tpu_custom_call.1} parent=1 // pred_region
      %3413 = dma.done [#allocation6], 768
    $region41: #{tpu_custom_call.1} parent=1 // pred_fallthru
      _
    %3414 = vsyncpa [#allocation5], 1
    %3415 = vsyncpa [#allocation8], 1
    %3416 = vsyncpa [#allocation6], 1

</llo_original>
